<compile_context>
chip_gen: v5e
topology: v5e:2x2
jax: 0.10.0
libtpu: 0.0.40
codegen_flags: <defaults>
</compile_context>

<pallas_src>
import math

import numpy as np

import jax
import jax.numpy as jnp
from jax.experimental import pallas as pl
from jax.experimental.pallas import tpu as pltpu


def _vmem():
    # whole-array-in-VMEM spec (everything here is small)
    return pl.BlockSpec(memory_space=pltpu.MemorySpace.VMEM)


def _tree_sum(terms):
    """Sum a list of arrays with a balanced tree (no serial accumulator chain)."""
    terms = list(terms)
    while len(terms) > 1:
        nxt = [terms[i] + terms[i + 1] for i in range(0, len(terms) - 1, 2)]
        if len(terms) % 2:
            nxt.append(terms[-1])
        terms = nxt
    return terms[0]


# ---------------------------------------------------------------------------
# The single fused Pallas kernel
# ---------------------------------------------------------------------------
def fused_net_kernel(x_ref, m1_ref, b1_ref, m2_ref, b2_ref,
                     w3_ref, b3_ref, w4_ref, b4_ref, out_ref, flat_ref):
    B = x_ref.shape[0]
    x = x_ref[...]                                        # (B, 28, 28)

    # ---- conv1: 5 row-shift GEMMs vs banded matrices, tree-summed --------------
    # output rows = (b, h_out 0..23); lanes = w_par*120 + (w_out//2)*10 + oc
    y1 = _tree_sum(
        jnp.dot(x[:, ti:ti + 24, :].reshape(B * 24, 28), m1_ref[ti],
                preferred_element_type=jnp.float32)
        for ti in range(5))                               # (B*24, 240)

    # ---- 2x2 max-pool #1: h = adjacent row pairs, w = two contiguous lane halves
    y1 = y1.reshape(B, 12, 2, 240)
    ph = jnp.maximum(y1[:, :, 0, :], y1[:, :, 1, :])      # (B, 12, 240)
    a1 = jnp.maximum(ph[:, :, :120], ph[:, :, 120:])      # (B, 12, 120), lane = w*10+ic
    a1 = jnp.maximum(a1 + b1_ref[...], 0.0)               # bias/relu commute with max

    # ---- conv2: 5 row-shift GEMMs vs banded matrices, tree-summed --------------
    # output rows = (b, h_out 0..7); lanes = w_par*80 + (w_out//2)*20 + oc
    y2 = _tree_sum(
        jnp.dot(a1[:, ti:ti + 8, :].reshape(B * 8, 120), m2_ref[ti],
                preferred_element_type=jnp.float32)
        for ti in range(5))                               # (B*8, 160)

    # ---- 2x2 max-pool #2 + (h, w, c) flatten via 4 lane-offset scratch stores --
    y2 = y2.reshape(B, 8, 160)
    pw = jnp.maximum(y2[:, :, :80], y2[:, :, 80:])        # (B, 8, 80), lane = w*20+oc
    for hp in range(4):
        flat_ref[:, hp * 80:(hp + 1) * 80] = jnp.maximum(pw[:, 2 * hp, :],
                                                         pw[:, 2 * hp + 1, :])
    flat = jnp.maximum(flat_ref[...] + b2_ref[...], 0.0)  # (B, 320), lane = h*80+w*20+c

    # ---- fc1 (single GEMM) + fc2 + log_softmax over dim=0 (the batch) ----------
    h = jnp.maximum(
        jnp.dot(flat, w3_ref[...], preferred_element_type=jnp.float32) + b3_ref[...],
        0.0)                                              # (B, 50)
    logits = jnp.dot(h, w4_ref[...], preferred_element_type=jnp.float32) + b4_ref[...]
    m = jnp.max(logits, axis=0, keepdims=True)
    z = logits - m
    lse = jnp.log(jnp.sum(jnp.exp(z), axis=0, keepdims=True))
    out_ref[...] = z - lse


# ---------------------------------------------------------------------------
# Host-side prep (done once, batch-independent): banded conv matrices etc.
# ---------------------------------------------------------------------------
def _conv1_band_matrices(conv1_w):
    """(5, 28, 240): m[ti, w_in, (w%2)*120 + (w//2)*10 + oc] = W1[oc, ti, w_in - w]."""
    w = np.asarray(conv1_w, np.float32).reshape(10, 5, 5)      # (oc, ti, tj)
    m = np.zeros((5, 28, 240), np.float32)
    for ti in range(5):
        for wo in range(24):
            base = (wo % 2) * 120 + (wo // 2) * 10
            for tj in range(5):
                m[ti, wo + tj, base:base + 10] = w[:, ti, tj]
    return jnp.asarray(m)


def _conv2_band_matrices(conv2_w):
    """(5, 120, 160): m[ti, w_in*10+ic, (w%2)*80 + (w//2)*20 + oc] = W2[oc, ic, ti, w_in - w]."""
    w = np.asarray(conv2_w, np.float32)                        # (oc, ic, ti, tj)
    m = np.zeros((5, 120, 160), np.float32)
    for ti in range(5):
        for wo in range(8):
            base = (wo % 2) * 80 + (wo // 2) * 20
            for tj in range(5):
                wi = wo + tj
                m[ti, wi * 10:(wi + 1) * 10, base:base + 20] = w[:, :, ti, tj].T
    return jnp.asarray(m)


def prepare_params(params):
    """One-time re-layout of the weights (no batch dependence anywhere)."""
    return {
        "m1": _conv1_band_matrices(params["conv1_w"]),                    # (5, 28, 240)
        "b1": jnp.tile(params["conv1_b"], 12).reshape(1, 120),
        "m2": _conv2_band_matrices(params["conv2_w"]),                    # (5, 120, 160)
        "b2": jnp.tile(params["conv2_b"], 16).reshape(1, 320),
        # fc1 weight permuted to match the in-kernel flatten order h*80 + w*20 + c
        "w3": params["fc1_w"].reshape(50, 20, 4, 4).transpose(2, 3, 1, 0).reshape(320, 50),
        "b3": params["fc1_b"].reshape(1, 50),
        "w4": params["fc2_w"].T,                                          # (50, 10)
        "b4": params["fc2_b"].reshape(1, 10),
    }


# ---------------------------------------------------------------------------
# Forward pass (one fused pallas_call; x goes in raw, no host-side im2col)
# ---------------------------------------------------------------------------
def net_forward(prep, x):
    """x: (B, 1, 28, 28) f32 NCHW -> (B, 10) log-probabilities (dim=0 softmax)."""
    B = x.shape[0]
    # TODO(synk): training-mode Dropout2d / F.dropout (stochastic masking) not
    # implemented; eval-mode (identity) semantics only.
    return pl.pallas_call(
        fused_net_kernel,
        out_shape=jax.ShapeDtypeStruct((B, 10), jnp.float32),
        in_specs=[_vmem()] * 9,
        out_specs=_vmem(),
        scratch_shapes=[pltpu.VMEM((B, 320), jnp.float32)],   # flatten buffer
        compiler_params=pltpu.CompilerParams(vmem_limit_bytes=32 * 1024 * 1024),
    )(x.reshape(B, 28, 28), prep["m1"], prep["b1"], prep["m2"], prep["b2"],
      prep["w3"], prep["b3"], prep["w4"], prep["b4"])


# ---------------------------------------------------------------------------
# Parameters (deterministic, PyTorch default-ish uniform init)
# ---------------------------------------------------------------------------
def init_params(key):
    def uinit(k, shape, fan_in):
        bound = 1.0 / math.sqrt(fan_in)
        return jax.random.uniform(k, shape, jnp.float32, -bound, bound)

    ks = jax.random.split(key, 8)
    return {
        "conv1_w": uinit(ks[0], (10, 1, 5, 5), 1 * 5 * 5),
        "conv1_b": uinit(ks[1], (10,), 1 * 5 * 5),
        "conv2_w": uinit(ks[2], (20, 10, 5, 5), 10 * 5 * 5),
        "conv2_b": uinit(ks[3], (20,), 10 * 5 * 5),
        "fc1_w":   uinit(ks[4], (50, 320), 320),
        "fc1_b":   uinit(ks[5], (50,), 320),
        "fc2_w":   uinit(ks[6], (10, 50), 50),
        "fc2_b":   uinit(ks[7], (10,), 50),
    }


# ---------------------------------------------------------------------------
# Pure-JAX reference (mirrors the PyTorch module) for a correctness check
# ---------------------------------------------------------------------------
def _maxpool_nchw(y):
    B, C, H, W = y.shape
    return jnp.max(y.reshape(B, C, H // 2, 2, W // 2, 2), axis=(3, 5))


def net_reference(params, x):
    dn = ("NCHW", "OIHW", "NCHW")
    y = jax.lax.conv_general_dilated(x, params["conv1_w"], (1, 1), "VALID",
                                     dimension_numbers=dn)
    y = y + params["conv1_b"][None, :, None, None]
    y = jnp.maximum(_maxpool_nchw(y), 0.0)
    y = jax.lax.conv_general_dilated(y, params["conv2_w"], (1, 1), "VALID",
                                     dimension_numbers=dn)
    y = y + params["conv2_b"][None, :, None, None]
    y = jnp.maximum(_maxpool_nchw(y), 0.0)
    flat = y.reshape(y.shape[0], -1)                     # (B, 320), (c,h,w) order
    h = jnp.maximum(flat @ params["fc1_w"].T + params["fc1_b"], 0.0)
    logits = h @ params["fc2_w"].T + params["fc2_b"]
    return jax.nn.log_softmax(logits, axis=0)


if __name__ == "__main__":
    key = jax.random.PRNGKey(0)
    kx, kp = jax.random.split(key)
    B = 2
    x = jax.random.normal(kx, (B, 1, 28, 28), jnp.float32)   # batch=2, MNIST-sized
    params = init_params(kp)
    prep = prepare_params(params)

    fwd = jax.jit(net_forward)
    out = jax.block_until_ready(fwd(prep, x))

    assert out.shape == (B, 10) and out.dtype == jnp.float32

    # correctness vs pure-JAX reference of the PyTorch module
    ref = jax.block_until_ready(net_reference(params, x))
    err = float(jnp.max(jnp.abs(out - ref)))
    assert err < 1e-4, f"mismatch vs reference: {err}"

    # log_softmax over dim=0: each column's exps must sum to 1
    colsum = jnp.sum(jnp.exp(out), axis=0)
    assert bool(jnp.all(jnp.abs(colsum - 1.0) < 1e-4))

    print("KERNEL_OK")
</pallas_src>

<mosaic_0001>
module attributes {stable_mosaic.version = 11 : i64} {
  func.func @fused_net_kernel(%arg0: memref<2x28x28xf32, #tpu.memory_space<vmem>>, %arg1: memref<5x28x240xf32, #tpu.memory_space<vmem>>, %arg2: memref<1x120xf32, #tpu.memory_space<vmem>>, %arg3: memref<5x120x160xf32, #tpu.memory_space<vmem>>, %arg4: memref<1x320xf32, #tpu.memory_space<vmem>>, %arg5: memref<320x50xf32, #tpu.memory_space<vmem>>, %arg6: memref<1x50xf32, #tpu.memory_space<vmem>>, %arg7: memref<50x10xf32, #tpu.memory_space<vmem>>, %arg8: memref<1x10xf32, #tpu.memory_space<vmem>>, %arg9: memref<2x10xf32, #tpu.memory_space<vmem>>, %arg10: memref<2x320xf32, #tpu.memory_space<vmem>>) attributes {dimension_semantics = [], scalar_prefetch = 0 : i64, scratch_operands = 1 : i64, tpu.core_type = #tpu.core_type<tc>} {
    %c0 = arith.constant 0 : index
    %c0_0 = arith.constant 0 : index
    %c0_1 = arith.constant 0 : index
    %0 = vector.load %arg0[%c0, %c0_0, %c0_1] : memref<2x28x28xf32, #tpu.memory_space<vmem>>, vector<2x28x28xf32>
    %1 = vector.extract_strided_slice %0 {offsets = [0, 0, 0], sizes = [2, 24, 28], strides = [1, 1, 1]} : vector<2x28x28xf32> to vector<2x24x28xf32>
    %2 = vector.shape_cast %1 : vector<2x24x28xf32> to vector<48x28xf32>
    %c0_2 = arith.constant 0 : index
    %c0_3 = arith.constant 0 : index
    %c0_4 = arith.constant 0 : index
    %3 = vector.load %arg1[%c0_2, %c0_3, %c0_4] : memref<5x28x240xf32, #tpu.memory_space<vmem>>, vector<1x28x240xf32>
    %4 = vector.shape_cast %3 : vector<1x28x240xf32> to vector<28x240xf32>
    %cst = arith.constant dense<0.000000e+00> : vector<48x240xf32>
    %5 = tpu.matmul %2, %4, %cst {dimension_numbers = #tpu.dot_dimension_numbers<[1], [0], [0], [1], [0, 0, 1, 1], [], []>} : vector<48x28xf32>, vector<28x240xf32>, vector<48x240xf32> -> vector<48x240xf32>
    %6 = vector.extract_strided_slice %0 {offsets = [0, 1, 0], sizes = [2, 24, 28], strides = [1, 1, 1]} : vector<2x28x28xf32> to vector<2x24x28xf32>
    %7 = vector.shape_cast %6 : vector<2x24x28xf32> to vector<48x28xf32>
    %c1 = arith.constant 1 : index
    %c0_5 = arith.constant 0 : index
    %c0_6 = arith.constant 0 : index
    %8 = vector.load %arg1[%c1, %c0_5, %c0_6] : memref<5x28x240xf32, #tpu.memory_space<vmem>>, vector<1x28x240xf32>
    %9 = vector.shape_cast %8 : vector<1x28x240xf32> to vector<28x240xf32>
    %cst_7 = arith.constant dense<0.000000e+00> : vector<48x240xf32>
    %10 = tpu.matmul %7, %9, %cst_7 {dimension_numbers = #tpu.dot_dimension_numbers<[1], [0], [0], [1], [0, 0, 1, 1], [], []>} : vector<48x28xf32>, vector<28x240xf32>, vector<48x240xf32> -> vector<48x240xf32>
    %11 = vector.extract_strided_slice %0 {offsets = [0, 2, 0], sizes = [2, 24, 28], strides = [1, 1, 1]} : vector<2x28x28xf32> to vector<2x24x28xf32>
    %12 = vector.shape_cast %11 : vector<2x24x28xf32> to vector<48x28xf32>
    %c2 = arith.constant 2 : index
    %c0_8 = arith.constant 0 : index
    %c0_9 = arith.constant 0 : index
    %13 = vector.load %arg1[%c2, %c0_8, %c0_9] : memref<5x28x240xf32, #tpu.memory_space<vmem>>, vector<1x28x240xf32>
    %14 = vector.shape_cast %13 : vector<1x28x240xf32> to vector<28x240xf32>
    %cst_10 = arith.constant dense<0.000000e+00> : vector<48x240xf32>
    %15 = tpu.matmul %12, %14, %cst_10 {dimension_numbers = #tpu.dot_dimension_numbers<[1], [0], [0], [1], [0, 0, 1, 1], [], []>} : vector<48x28xf32>, vector<28x240xf32>, vector<48x240xf32> -> vector<48x240xf32>
    %16 = vector.extract_strided_slice %0 {offsets = [0, 3, 0], sizes = [2, 24, 28], strides = [1, 1, 1]} : vector<2x28x28xf32> to vector<2x24x28xf32>
    %17 = vector.shape_cast %16 : vector<2x24x28xf32> to vector<48x28xf32>
    %c3 = arith.constant 3 : index
    %c0_11 = arith.constant 0 : index
    %c0_12 = arith.constant 0 : index
    %18 = vector.load %arg1[%c3, %c0_11, %c0_12] : memref<5x28x240xf32, #tpu.memory_space<vmem>>, vector<1x28x240xf32>
    %19 = vector.shape_cast %18 : vector<1x28x240xf32> to vector<28x240xf32>
    %cst_13 = arith.constant dense<0.000000e+00> : vector<48x240xf32>
    %20 = tpu.matmul %17, %19, %cst_13 {dimension_numbers = #tpu.dot_dimension_numbers<[1], [0], [0], [1], [0, 0, 1, 1], [], []>} : vector<48x28xf32>, vector<28x240xf32>, vector<48x240xf32> -> vector<48x240xf32>
    %21 = vector.extract_strided_slice %0 {offsets = [0, 4, 0], sizes = [2, 24, 28], strides = [1, 1, 1]} : vector<2x28x28xf32> to vector<2x24x28xf32>
    %22 = vector.shape_cast %21 : vector<2x24x28xf32> to vector<48x28xf32>
    %c4 = arith.constant 4 : index
    %c0_14 = arith.constant 0 : index
    %c0_15 = arith.constant 0 : index
    %23 = vector.load %arg1[%c4, %c0_14, %c0_15] : memref<5x28x240xf32, #tpu.memory_space<vmem>>, vector<1x28x240xf32>
    %24 = vector.shape_cast %23 : vector<1x28x240xf32> to vector<28x240xf32>
    %cst_16 = arith.constant dense<0.000000e+00> : vector<48x240xf32>
    %25 = tpu.matmul %22, %24, %cst_16 {dimension_numbers = #tpu.dot_dimension_numbers<[1], [0], [0], [1], [0, 0, 1, 1], [], []>} : vector<48x28xf32>, vector<28x240xf32>, vector<48x240xf32> -> vector<48x240xf32>
    %26 = arith.addf %5, %10 : vector<48x240xf32>
    %27 = arith.addf %15, %20 : vector<48x240xf32>
    %28 = arith.addf %26, %27 : vector<48x240xf32>
    %29 = arith.addf %28, %25 : vector<48x240xf32>
    %30 = vector.shape_cast %29 : vector<48x240xf32> to vector<2x12x2x240xf32>
    %31 = vector.extract_strided_slice %30 {offsets = [0, 0, 0, 0], sizes = [2, 12, 1, 240], strides = [1, 1, 1, 1]} : vector<2x12x2x240xf32> to vector<2x12x1x240xf32>
    %32 = vector.shape_cast %31 : vector<2x12x1x240xf32> to vector<2x12x240xf32>
    %33 = vector.extract_strided_slice %30 {offsets = [0, 0, 1, 0], sizes = [2, 12, 1, 240], strides = [1, 1, 1, 1]} : vector<2x12x2x240xf32> to vector<2x12x1x240xf32>
    %34 = vector.shape_cast %33 : vector<2x12x1x240xf32> to vector<2x12x240xf32>
    %35 = arith.maximumf %32, %34 : vector<2x12x240xf32>
    %36 = vector.extract_strided_slice %35 {offsets = [0, 0, 0], sizes = [2, 12, 120], strides = [1, 1, 1]} : vector<2x12x240xf32> to vector<2x12x120xf32>
    %37 = vector.extract_strided_slice %35 {offsets = [0, 0, 120], sizes = [2, 12, 120], strides = [1, 1, 1]} : vector<2x12x240xf32> to vector<2x12x120xf32>
    %38 = arith.maximumf %36, %37 : vector<2x12x120xf32>
    %c0_17 = arith.constant 0 : index
    %c0_18 = arith.constant 0 : index
    %39 = vector.load %arg2[%c0_17, %c0_18] : memref<1x120xf32, #tpu.memory_space<vmem>>, vector<1x120xf32>
    %40 = vector.shape_cast %39 : vector<1x120xf32> to vector<1x1x120xf32>
    %41 = vector.broadcast %40 : vector<1x1x120xf32> to vector<2x12x120xf32>
    %42 = arith.addf %38, %41 : vector<2x12x120xf32>
    %cst_19 = arith.constant 0.000000e+00 : f32
    %43 = vector.broadcast %cst_19 : f32 to vector<2x12x120xf32>
    %44 = arith.maximumf %42, %43 : vector<2x12x120xf32>
    %45 = vector.extract_strided_slice %44 {offsets = [0, 0, 0], sizes = [2, 8, 120], strides = [1, 1, 1]} : vector<2x12x120xf32> to vector<2x8x120xf32>
    %46 = vector.shape_cast %45 : vector<2x8x120xf32> to vector<16x120xf32>
    %c0_20 = arith.constant 0 : index
    %c0_21 = arith.constant 0 : index
    %c0_22 = arith.constant 0 : index
    %47 = vector.load %arg3[%c0_20, %c0_21, %c0_22] : memref<5x120x160xf32, #tpu.memory_space<vmem>>, vector<1x120x160xf32>
    %48 = vector.shape_cast %47 : vector<1x120x160xf32> to vector<120x160xf32>
    %cst_23 = arith.constant dense<0.000000e+00> : vector<16x160xf32>
    %49 = tpu.matmul %46, %48, %cst_23 {dimension_numbers = #tpu.dot_dimension_numbers<[1], [0], [0], [1], [0, 0, 1, 1], [], []>} : vector<16x120xf32>, vector<120x160xf32>, vector<16x160xf32> -> vector<16x160xf32>
    %50 = vector.extract_strided_slice %44 {offsets = [0, 1, 0], sizes = [2, 8, 120], strides = [1, 1, 1]} : vector<2x12x120xf32> to vector<2x8x120xf32>
    %51 = vector.shape_cast %50 : vector<2x8x120xf32> to vector<16x120xf32>
    %c1_24 = arith.constant 1 : index
    %c0_25 = arith.constant 0 : index
    %c0_26 = arith.constant 0 : index
    %52 = vector.load %arg3[%c1_24, %c0_25, %c0_26] : memref<5x120x160xf32, #tpu.memory_space<vmem>>, vector<1x120x160xf32>
    %53 = vector.shape_cast %52 : vector<1x120x160xf32> to vector<120x160xf32>
    %cst_27 = arith.constant dense<0.000000e+00> : vector<16x160xf32>
    %54 = tpu.matmul %51, %53, %cst_27 {dimension_numbers = #tpu.dot_dimension_numbers<[1], [0], [0], [1], [0, 0, 1, 1], [], []>} : vector<16x120xf32>, vector<120x160xf32>, vector<16x160xf32> -> vector<16x160xf32>
    %55 = vector.extract_strided_slice %44 {offsets = [0, 2, 0], sizes = [2, 8, 120], strides = [1, 1, 1]} : vector<2x12x120xf32> to vector<2x8x120xf32>
    %56 = vector.shape_cast %55 : vector<2x8x120xf32> to vector<16x120xf32>
    %c2_28 = arith.constant 2 : index
    %c0_29 = arith.constant 0 : index
    %c0_30 = arith.constant 0 : index
    %57 = vector.load %arg3[%c2_28, %c0_29, %c0_30] : memref<5x120x160xf32, #tpu.memory_space<vmem>>, vector<1x120x160xf32>
    %58 = vector.shape_cast %57 : vector<1x120x160xf32> to vector<120x160xf32>
    %cst_31 = arith.constant dense<0.000000e+00> : vector<16x160xf32>
    %59 = tpu.matmul %56, %58, %cst_31 {dimension_numbers = #tpu.dot_dimension_numbers<[1], [0], [0], [1], [0, 0, 1, 1], [], []>} : vector<16x120xf32>, vector<120x160xf32>, vector<16x160xf32> -> vector<16x160xf32>
    %60 = vector.extract_strided_slice %44 {offsets = [0, 3, 0], sizes = [2, 8, 120], strides = [1, 1, 1]} : vector<2x12x120xf32> to vector<2x8x120xf32>
    %61 = vector.shape_cast %60 : vector<2x8x120xf32> to vector<16x120xf32>
    %c3_32 = arith.constant 3 : index
    %c0_33 = arith.constant 0 : index
    %c0_34 = arith.constant 0 : index
    %62 = vector.load %arg3[%c3_32, %c0_33, %c0_34] : memref<5x120x160xf32, #tpu.memory_space<vmem>>, vector<1x120x160xf32>
    %63 = vector.shape_cast %62 : vector<1x120x160xf32> to vector<120x160xf32>
    %cst_35 = arith.constant dense<0.000000e+00> : vector<16x160xf32>
    %64 = tpu.matmul %61, %63, %cst_35 {dimension_numbers = #tpu.dot_dimension_numbers<[1], [0], [0], [1], [0, 0, 1, 1], [], []>} : vector<16x120xf32>, vector<120x160xf32>, vector<16x160xf32> -> vector<16x160xf32>
    %65 = vector.extract_strided_slice %44 {offsets = [0, 4, 0], sizes = [2, 8, 120], strides = [1, 1, 1]} : vector<2x12x120xf32> to vector<2x8x120xf32>
    %66 = vector.shape_cast %65 : vector<2x8x120xf32> to vector<16x120xf32>
    %c4_36 = arith.constant 4 : index
    %c0_37 = arith.constant 0 : index
    %c0_38 = arith.constant 0 : index
    %67 = vector.load %arg3[%c4_36, %c0_37, %c0_38] : memref<5x120x160xf32, #tpu.memory_space<vmem>>, vector<1x120x160xf32>
    %68 = vector.shape_cast %67 : vector<1x120x160xf32> to vector<120x160xf32>
    %cst_39 = arith.constant dense<0.000000e+00> : vector<16x160xf32>
    %69 = tpu.matmul %66, %68, %cst_39 {dimension_numbers = #tpu.dot_dimension_numbers<[1], [0], [0], [1], [0, 0, 1, 1], [], []>} : vector<16x120xf32>, vector<120x160xf32>, vector<16x160xf32> -> vector<16x160xf32>
    %70 = arith.addf %49, %54 : vector<16x160xf32>
    %71 = arith.addf %59, %64 : vector<16x160xf32>
    %72 = arith.addf %70, %71 : vector<16x160xf32>
    %73 = arith.addf %72, %69 : vector<16x160xf32>
    %74 = vector.shape_cast %73 : vector<16x160xf32> to vector<2x8x160xf32>
    %75 = vector.extract_strided_slice %74 {offsets = [0, 0, 0], sizes = [2, 8, 80], strides = [1, 1, 1]} : vector<2x8x160xf32> to vector<2x8x80xf32>
    %76 = vector.extract_strided_slice %74 {offsets = [0, 0, 80], sizes = [2, 8, 80], strides = [1, 1, 1]} : vector<2x8x160xf32> to vector<2x8x80xf32>
    %77 = arith.maximumf %75, %76 : vector<2x8x80xf32>
    %78 = vector.extract_strided_slice %77 {offsets = [0, 0, 0], sizes = [2, 1, 80], strides = [1, 1, 1]} : vector<2x8x80xf32> to vector<2x1x80xf32>
    %79 = vector.shape_cast %78 : vector<2x1x80xf32> to vector<2x80xf32>
    %80 = vector.extract_strided_slice %77 {offsets = [0, 1, 0], sizes = [2, 1, 80], strides = [1, 1, 1]} : vector<2x8x80xf32> to vector<2x1x80xf32>
    %81 = vector.shape_cast %80 : vector<2x1x80xf32> to vector<2x80xf32>
    %82 = arith.maximumf %79, %81 : vector<2x80xf32>
    %c0_40 = arith.constant 0 : index
    %c0_41 = arith.constant 0 : index
    %83 = vector.load %arg10[%c0_40, %c0_41] : memref<2x320xf32, #tpu.memory_space<vmem>>, vector<2x80xf32>
    tpu.vector_store %arg10[%c0_40, %c0_41], %82 {strides = array<i32>} : memref<2x320xf32, #tpu.memory_space<vmem>>, vector<2x80xf32>,
    %84 = vector.extract_strided_slice %77 {offsets = [0, 2, 0], sizes = [2, 1, 80], strides = [1, 1, 1]} : vector<2x8x80xf32> to vector<2x1x80xf32>
    %85 = vector.shape_cast %84 : vector<2x1x80xf32> to vector<2x80xf32>
    %86 = vector.extract_strided_slice %77 {offsets = [0, 3, 0], sizes = [2, 1, 80], strides = [1, 1, 1]} : vector<2x8x80xf32> to vector<2x1x80xf32>
    %87 = vector.shape_cast %86 : vector<2x1x80xf32> to vector<2x80xf32>
    %88 = arith.maximumf %85, %87 : vector<2x80xf32>
    %c0_42 = arith.constant 0 : index
    %c80 = arith.constant 80 : index
    %89 = vector.load %arg10[%c0_42, %c80] : memref<2x320xf32, #tpu.memory_space<vmem>>, vector<2x80xf32>
    tpu.vector_store %arg10[%c0_42, %c80], %88 {strides = array<i32>} : memref<2x320xf32, #tpu.memory_space<vmem>>, vector<2x80xf32>,
    %90 = vector.extract_strided_slice %77 {offsets = [0, 4, 0], sizes = [2, 1, 80], strides = [1, 1, 1]} : vector<2x8x80xf32> to vector<2x1x80xf32>
    %91 = vector.shape_cast %90 : vector<2x1x80xf32> to vector<2x80xf32>
    %92 = vector.extract_strided_slice %77 {offsets = [0, 5, 0], sizes = [2, 1, 80], strides = [1, 1, 1]} : vector<2x8x80xf32> to vector<2x1x80xf32>
    %93 = vector.shape_cast %92 : vector<2x1x80xf32> to vector<2x80xf32>
    %94 = arith.maximumf %91, %93 : vector<2x80xf32>
    %c0_43 = arith.constant 0 : index
    %c160 = arith.constant 160 : index
    %95 = vector.load %arg10[%c0_43, %c160] : memref<2x320xf32, #tpu.memory_space<vmem>>, vector<2x80xf32>
    tpu.vector_store %arg10[%c0_43, %c160], %94 {strides = array<i32>} : memref<2x320xf32, #tpu.memory_space<vmem>>, vector<2x80xf32>,
    %96 = vector.extract_strided_slice %77 {offsets = [0, 6, 0], sizes = [2, 1, 80], strides = [1, 1, 1]} : vector<2x8x80xf32> to vector<2x1x80xf32>
    %97 = vector.shape_cast %96 : vector<2x1x80xf32> to vector<2x80xf32>
    %98 = vector.extract_strided_slice %77 {offsets = [0, 7, 0], sizes = [2, 1, 80], strides = [1, 1, 1]} : vector<2x8x80xf32> to vector<2x1x80xf32>
    %99 = vector.shape_cast %98 : vector<2x1x80xf32> to vector<2x80xf32>
    %100 = arith.maximumf %97, %99 : vector<2x80xf32>
    %c0_44 = arith.constant 0 : index
    %c240 = arith.constant 240 : index
    %101 = vector.load %arg10[%c0_44, %c240] : memref<2x320xf32, #tpu.memory_space<vmem>>, vector<2x80xf32>
    tpu.vector_store %arg10[%c0_44, %c240], %100 {strides = array<i32>} : memref<2x320xf32, #tpu.memory_space<vmem>>, vector<2x80xf32>,
    %c0_45 = arith.constant 0 : index
    %c0_46 = arith.constant 0 : index
    %102 = vector.load %arg10[%c0_45, %c0_46] : memref<2x320xf32, #tpu.memory_space<vmem>>, vector<2x320xf32>
    %c0_47 = arith.constant 0 : index
    %c0_48 = arith.constant 0 : index
    %103 = vector.load %arg4[%c0_47, %c0_48] : memref<1x320xf32, #tpu.memory_space<vmem>>, vector<1x320xf32>
    %104 = vector.broadcast %103 : vector<1x320xf32> to vector<2x320xf32>
    %105 = arith.addf %102, %104 : vector<2x320xf32>
    %cst_49 = arith.constant 0.000000e+00 : f32
    %106 = vector.broadcast %cst_49 : f32 to vector<2x320xf32>
    %107 = arith.maximumf %105, %106 : vector<2x320xf32>
    %c0_50 = arith.constant 0 : index
    %c0_51 = arith.constant 0 : index
    %108 = vector.load %arg5[%c0_50, %c0_51] : memref<320x50xf32, #tpu.memory_space<vmem>>, vector<320x50xf32>
    %cst_52 = arith.constant dense<0.000000e+00> : vector<2x50xf32>
    %109 = tpu.matmul %107, %108, %cst_52 {dimension_numbers = #tpu.dot_dimension_numbers<[1], [0], [0], [1], [0, 0, 1, 1], [], []>} : vector<2x320xf32>, vector<320x50xf32>, vector<2x50xf32> -> vector<2x50xf32>
    %c0_53 = arith.constant 0 : index
    %c0_54 = arith.constant 0 : index
    %110 = vector.load %arg6[%c0_53, %c0_54] : memref<1x50xf32, #tpu.memory_space<vmem>>, vector<1x50xf32>
    %111 = vector.broadcast %110 : vector<1x50xf32> to vector<2x50xf32>
    %112 = arith.addf %109, %111 : vector<2x50xf32>
    %cst_55 = arith.constant 0.000000e+00 : f32
    %113 = vector.broadcast %cst_55 : f32 to vector<2x50xf32>
    %114 = arith.maximumf %112, %113 : vector<2x50xf32>
    %c0_56 = arith.constant 0 : index
    %c0_57 = arith.constant 0 : index
    %115 = vector.load %arg7[%c0_56, %c0_57] : memref<50x10xf32, #tpu.memory_space<vmem>>, vector<50x10xf32>
    %cst_58 = arith.constant dense<0.000000e+00> : vector<2x10xf32>
    %116 = tpu.matmul %114, %115, %cst_58 {dimension_numbers = #tpu.dot_dimension_numbers<[1], [0], [0], [1], [0, 0, 1, 1], [], []>} : vector<2x50xf32>, vector<50x10xf32>, vector<2x10xf32> -> vector<2x10xf32>
    %c0_59 = arith.constant 0 : index
    %c0_60 = arith.constant 0 : index
    %117 = vector.load %arg8[%c0_59, %c0_60] : memref<1x10xf32, #tpu.memory_space<vmem>>, vector<1x10xf32>
    %118 = vector.broadcast %117 : vector<1x10xf32> to vector<2x10xf32>
    %119 = arith.addf %116, %118 : vector<2x10xf32>
    %cst_61 = arith.constant dense<0xFF800000> : vector<10xf32>
    %120 = vector.multi_reduction <maximumf>, %119, %cst_61 [0] : vector<2x10xf32> to vector<10xf32>
    %121 = vector.shape_cast %120 : vector<10xf32> to vector<1x10xf32>
    %122 = vector.broadcast %121 : vector<1x10xf32> to vector<2x10xf32>
    %123 = arith.subf %119, %122 : vector<2x10xf32>
    %124 = math.exp %123 : vector<2x10xf32>
    %cst_62 = arith.constant dense<0.000000e+00> : vector<10xf32>
    %125 = vector.multi_reduction <add>, %124, %cst_62 [0] : vector<2x10xf32> to vector<10xf32>
    %126 = vector.shape_cast %125 : vector<10xf32> to vector<1x10xf32>
    %127 = math.log %126 : vector<1x10xf32>
    %128 = vector.broadcast %127 : vector<1x10xf32> to vector<2x10xf32>
    %129 = arith.subf %123, %128 : vector<2x10xf32>
    %c0_63 = arith.constant 0 : index
    %c0_64 = arith.constant 0 : index
    %130 = vector.load %arg9[%c0_63, %c0_64] : memref<2x10xf32, #tpu.memory_space<vmem>>, vector<2x10xf32>
    tpu.vector_store %arg9[%c0_63, %c0_64], %129 {strides = array<i32>} : memref<2x10xf32, #tpu.memory_space<vmem>>, vector<2x10xf32>,
    return
  }
}

</mosaic_0001>

<llo_original>
// kernel: net_forward.1
$region0: #{net_forward.1}
  #allocation0 [shape = 'u32[]', space=smem, size = 0x4, offset = 0x4, fixed_abs, tag = 'smem constant byte address 0x4 - core index']
  #allocation1 [shape = 'u32[72,128]{1,0:T(1,128)}', space=vmem, size = 0x9000, scoped, tag = 'internal scratch']
  #allocation2 [shape = 'f32[2,320]{1,0:T(2,128)}', space=vmem, size = 0xc00, scoped, tag = 'scratch operand']
  %s0 = inlined_call_operand.vmem [shape: f32[2,28,28], index: 0, kind: input, shape index: {}]
  %s1 = inlined_call_operand.vmem [shape: f32[5,28,240], index: 1, kind: input, shape index: {}]
  %s2 = inlined_call_operand.vmem [shape: f32[1,120], index: 2, kind: input, shape index: {}]
  %s3 = inlined_call_operand.vmem [shape: f32[5,120,160], index: 3, kind: input, shape index: {}]
  %s4 = inlined_call_operand.vmem [shape: f32[1,320], index: 4, kind: input, shape index: {}]
  %s5 = inlined_call_operand.vmem [shape: f32[320,50], index: 5, kind: input, shape index: {}]
  %s6 = inlined_call_operand.vmem [shape: f32[1,50], index: 6, kind: input, shape index: {}]
  %s7 = inlined_call_operand.vmem [shape: f32[50,10], index: 7, kind: input, shape index: {}]
  %s8 = inlined_call_operand.vmem [shape: f32[1,10], index: 8, kind: input, shape index: {}]
  %s9 = inlined_call_operand.hbm [shape: f32[2,10], index: 9, kind: output, shape index: {}]
  %s10 = sld [smem:[#allocation0]]
  $region46: #{net_forward.1} parent=0
    _
  %s12 = ssub.s32 1, %s10
  %s13 = scalar_select 0, %s12, %s10
  $region1: #{net_forward.1} parent=0
    #allocation3 [shape = 'u8[1024]{0}', space=vmem, size = 0x400, scoped, tag = 'output window, operand 0, single buffered']
    #allocation4 [shape = 's32[1]{0}', space=sflag, size = 0x4, scoped, tag = 'scoped memory for net_forward.1']
    %14 = vsyncpa [#allocation4], 0
    // Predicated region
    $region2: #{net_forward.1} parent=1 // pred_check
      _
    $region3: #{net_forward.1} parent=1 // pred_check_branch
      %16 = sbr.rel (0) target = $region5
    $region4: #{net_forward.1} parent=1 // pred_region
      _
    $region5: #{net_forward.1} parent=1 // pred_fallthru
      _
    // Predicated region
    $region6: #{net_forward.1} parent=1 // pred_check
      _
    $region7: #{net_forward.1} parent=1 // pred_check_branch
      %18 = sbr.rel (0) target = $region9
    $region8: #{net_forward.1} parent=1 // pred_region
      _
    $region9: #{net_forward.1} parent=1 // pred_fallthru
      _
    // Predicated region
    $region10: #{net_forward.1} parent=1 // pred_check
      _
    $region11: #{net_forward.1} parent=1 // pred_check_branch
      %20 = sbr.rel (0) target = $region13
    $region12: #{net_forward.1} parent=1 // pred_region
      _
    $region13: #{net_forward.1} parent=1 // pred_fallthru
      _
    // Predicated region
    $region14: #{net_forward.1} parent=1 // pred_check
      _
    $region15: #{net_forward.1} parent=1 // pred_check_branch
      %22 = sbr.rel (0) target = $region17
    $region16: #{net_forward.1} parent=1 // pred_region
      _
    $region17: #{net_forward.1} parent=1 // pred_fallthru
      _
    // Predicated region
    $region18: #{net_forward.1} parent=1 // pred_check
      _
    $region19: #{net_forward.1} parent=1 // pred_check_branch
      %24 = sbr.rel (0) target = $region21
    $region20: #{net_forward.1} parent=1 // pred_region
      _
    $region21: #{net_forward.1} parent=1 // pred_fallthru
      _
    // Predicated region
    $region22: #{net_forward.1} parent=1 // pred_check
      _
    $region23: #{net_forward.1} parent=1 // pred_check_branch
      %26 = sbr.rel (0) target = $region25
    $region24: #{net_forward.1} parent=1 // pred_region
      _
    $region25: #{net_forward.1} parent=1 // pred_fallthru
      _
    // Predicated region
    $region26: #{net_forward.1} parent=1 // pred_check
      _
    $region27: #{net_forward.1} parent=1 // pred_check_branch
      %28 = sbr.rel (0) target = $region29
    $region28: #{net_forward.1} parent=1 // pred_region
      _
    $region29: #{net_forward.1} parent=1 // pred_fallthru
      _
    // Predicated region
    $region30: #{net_forward.1} parent=1 // pred_check
      _
    $region31: #{net_forward.1} parent=1 // pred_check_branch
      %30 = sbr.rel (0) target = $region33
    $region32: #{net_forward.1} parent=1 // pred_region
      _
    $region33: #{net_forward.1} parent=1 // pred_fallthru
      _
    // Predicated region
    $region34: #{net_forward.1} parent=1 // pred_check
      _
    $region35: #{net_forward.1} parent=1 // pred_check_branch
      %32 = sbr.rel (0) target = $region37
    $region36: #{net_forward.1} parent=1 // pred_region
      _
    $region37: #{net_forward.1} parent=1 // pred_fallthru
      _
    %v33 = vld [vmem:[%s0] sm:$0xff]
    %v34 = vld [vmem:[%s0 + $0x8] sm:$0xff]
    %v35 = vld [vmem:[%s0 + $0x10] sm:$0xff]
    %v36 = vld [vmem:[%s0 + $0x18] sm:$0xf]
    %v37 = vld [vmem:[%s0 + $0x20] sm:$0xff]
    %v38 = vld [vmem:[%s0 + $0x28] sm:$0xff]
    %v39 = vld [vmem:[%s0 + $0x30] sm:$0xff]
    %v40 = vld [vmem:[%s0 + $0x38] sm:$0xf]
    %v41 = vld [vmem:[%s1] sm:$0xff]
    %v42 = vld [vmem:[%s1 + $0x8] sm:$0xff]
    %v43 = vld [vmem:[%s1 + $0x10] sm:$0xff]
    %v44 = vld [vmem:[%s1 + $0x18] sm:$0xff]
    %v45 = vld [vmem:[%s1 + $0x20] sm:$0xff]
    %v46 = vld [vmem:[%s1 + $0x28] sm:$0xff]
    %v47 = vld [vmem:[%s1 + $0x30] sm:$0xf]
    %v48 = vld [vmem:[%s1 + $0x38] sm:$0xf]
    %vm57 = vcmask 1046528
    %v58 = vrot.slane %v33, 1
    %v59 = vrot.slane %v34, 1
    %v60 = vsel %vm57, %v58, %v59
    %v61 = vrot.slane %v35, 1
    %v62 = vsel %vm57, %v59, %v61
    %v63 = vrot.slane %v36, 1
    %v64 = vsel %vm57, %v61, %v63
    %v65 = vrot.slane %v37, 1
    %v66 = vrot.slane %v38, 1
    %v67 = vsel %vm57, %v65, %v66
    %v68 = vrot.slane %v39, 1
    %v69 = vsel %vm57, %v66, %v68
    %v70 = vrot.slane %v40, 1
    %v71 = vsel %vm57, %v68, %v70
    %s72 = scalar_lea.vmem %s1, 64
    %v73 = vld [vmem:[%s72] sm:$0xff]
    %v74 = vld [vmem:[%s72 + $0x8] sm:$0xff]
    %v75 = vld [vmem:[%s72 + $0x10] sm:$0xff]
    %v76 = vld [vmem:[%s72 + $0x18] sm:$0xff]
    %v77 = vld [vmem:[%s72 + $0x20] sm:$0xff]
    %v78 = vld [vmem:[%s72 + $0x28] sm:$0xff]
    %v79 = vld [vmem:[%s72 + $0x30] sm:$0xf]
    %v80 = vld [vmem:[%s72 + $0x38] sm:$0xf]
    %vm81 = vcmask 228352
    %v82 = vsel %vm81, %v60, 0
    %v84 = vsel %vm81, %v62, 0
    %v86 = vsel %vm81, %v64, 0
    %v88 = vsel %vm81, %v67, 0
    %v90 = vsel %vm81, %v69, 0
    %v92 = vsel %vm81, %v71, 0
    %vm94 = vcmask 1043456
    %v96 = vsel %vm94, %v79, 0
    %v99 = vsel %vm94, %v80, 0
    %101 = vmatpush.msra.mxu0 0.0
    %102 = vmatpush.msra.mxu0 0.0
    %103 = vmatpush.msra.mxu0 0.0
    %104 = vmatpush.msra.mxu0 0.0
    %105 = vmatpush.msra.mxu0 0.0
    %106 = vmatpush.msra.mxu0 0.0
    %107 = vmatpush.msra.mxu0 0.0
    %108 = vmatpush.msra.mxu0 0.0
    %109 = vmatpush.msra.mxu0 0.0
    %110 = vmatpush.msra.mxu0 0.0
    %111 = vmatpush.msra.mxu0 0.0
    %112 = vmatpush.msra.mxu0 0.0
    %113 = vmatpush.msra.mxu0 %v96
    %114 = vmatpush.msra.mxu0 %v77
    %115 = vmatpush.msra.mxu0 %v75
    %116 = vmatpush.msra.mxu0 %v73
    %117 = vmatmul.f32.gmra.mxu0 %v82
    %v118 = vpop.f32.mrf.mxu0
    %v119 = vadd.f32 0.0, %v118
    %120 = vmatmul.f32.gmra.mxu0 %v84
    %v121 = vpop.f32.mrf.mxu0
    %v122 = vadd.f32 0.0, %v121
    %123 = vmatmul.f32.gmra.mxu0 %v86
    %v124 = vpop.f32.mrf.mxu0
    %v125 = vadd.f32 0.0, %v124
    %126 = vmatmul.f32.gmra.mxu0 %v88
    %v127 = vpop.f32.mrf.mxu0
    %v128 = vadd.f32 0.0, %v127
    %129 = vmatmul.f32.gmra.mxu0 %v90
    %v130 = vpop.f32.mrf.mxu0
    %v131 = vadd.f32 0.0, %v130
    %132 = vmatmul.f32.gmra.mxu0 %v92
    %v133 = vpop.f32.mrf.mxu0
    %v134 = vadd.f32 0.0, %v133
    %135 = vdwg.mxu0
    %136 = vmatpush.msra.mxu0 0.0
    %137 = vmatpush.msra.mxu0 0.0
    %138 = vmatpush.msra.mxu0 0.0
    %139 = vmatpush.msra.mxu0 0.0
    %140 = vmatpush.msra.mxu0 0.0
    %141 = vmatpush.msra.mxu0 0.0
    %142 = vmatpush.msra.mxu0 0.0
    %143 = vmatpush.msra.mxu0 0.0
    %144 = vmatpush.msra.mxu0 0.0
    %145 = vmatpush.msra.mxu0 0.0
    %146 = vmatpush.msra.mxu0 0.0
    %147 = vmatpush.msra.mxu0 0.0
    %148 = vmatpush.msra.mxu0 %v99
    %149 = vmatpush.msra.mxu0 %v78
    %150 = vmatpush.msra.mxu0 %v76
    %151 = vmatpush.msra.mxu0 %v74
    %152 = vmatmul.f32.gmra.mxu0 %v82
    %v153 = vpop.f32.mrf.mxu0
    %v154 = vadd.f32 0.0, %v153
    %155 = vmatmul.f32.gmra.mxu0 %v84
    %v156 = vpop.f32.mrf.mxu0
    %v157 = vadd.f32 0.0, %v156
    %158 = vmatmul.f32.gmra.mxu0 %v86
    %v159 = vpop.f32.mrf.mxu0
    %v160 = vadd.f32 0.0, %v159
    %161 = vmatmul.f32.gmra.mxu0 %v88
    %v162 = vpop.f32.mrf.mxu0
    %v163 = vadd.f32 0.0, %v162
    %164 = vmatmul.f32.gmra.mxu0 %v90
    %v165 = vpop.f32.mrf.mxu0
    %v166 = vadd.f32 0.0, %v165
    %167 = vmatmul.f32.gmra.mxu0 %v92
    %v168 = vpop.f32.mrf.mxu0
    %v169 = vadd.f32 0.0, %v168
    %170 = vdwg.mxu0
    %vm171 = vcmask 1045504
    %v172 = vrot.slane %v33, 2
    %v173 = vrot.slane %v34, 2
    %v174 = vsel %vm171, %v172, %v173
    %v175 = vrot.slane %v35, 2
    %v176 = vsel %vm171, %v173, %v175
    %v177 = vrot.slane %v36, 2
    %v178 = vsel %vm171, %v175, %v177
    %v179 = vrot.slane %v37, 2
    %v180 = vrot.slane %v38, 2
    %v181 = vsel %vm171, %v179, %v180
    %v182 = vrot.slane %v39, 2
    %v183 = vsel %vm171, %v180, %v182
    %v184 = vrot.slane %v40, 2
    %v185 = vsel %vm171, %v182, %v184
    %s186 = scalar_lea.vmem %s1, 128
    %v187 = vld [vmem:[%s186] sm:$0xff]
    %v188 = vld [vmem:[%s186 + $0x8] sm:$0xff]
    %v189 = vld [vmem:[%s186 + $0x10] sm:$0xff]
    %v190 = vld [vmem:[%s186 + $0x18] sm:$0xff]
    %v191 = vld [vmem:[%s186 + $0x20] sm:$0xff]
    %v192 = vld [vmem:[%s186 + $0x28] sm:$0xff]
    %v193 = vld [vmem:[%s186 + $0x30] sm:$0xf]
    %v194 = vld [vmem:[%s186 + $0x38] sm:$0xf]
    %vm195 = vcmask 1044480
    %v196 = vrot.slane %v33, 3
    %v197 = vrot.slane %v34, 3
    %v198 = vsel %vm195, %v196, %v197
    %v199 = vrot.slane %v35, 3
    %v200 = vsel %vm195, %v197, %v199
    %v201 = vrot.slane %v36, 3
    %v202 = vsel %vm195, %v199, %v201
    %v203 = vrot.slane %v37, 3
    %v204 = vrot.slane %v38, 3
    %v205 = vsel %vm195, %v203, %v204
    %v206 = vrot.slane %v39, 3
    %v207 = vsel %vm195, %v204, %v206
    %v208 = vrot.slane %v40, 3
    %v209 = vsel %vm195, %v206, %v208
    %s210 = scalar_lea.vmem %s1, 192
    %v211 = vld [vmem:[%s210] sm:$0xff]
    %v212 = vld [vmem:[%s210 + $0x8] sm:$0xff]
    %v213 = vld [vmem:[%s210 + $0x10] sm:$0xff]
    %v214 = vld [vmem:[%s210 + $0x18] sm:$0xff]
    %v215 = vld [vmem:[%s210 + $0x20] sm:$0xff]
    %v216 = vld [vmem:[%s210 + $0x28] sm:$0xff]
    %v217 = vld [vmem:[%s210 + $0x30] sm:$0xf]
    %v218 = vld [vmem:[%s210 + $0x38] sm:$0xf]
    %v219 = vsel %vm81, %v198, 0
    %v221 = vsel %vm81, %v200, 0
    %v223 = vsel %vm81, %v202, 0
    %v225 = vsel %vm81, %v205, 0
    %v227 = vsel %vm81, %v207, 0
    %v229 = vsel %vm81, %v209, 0
    %v232 = vsel %vm94, %v217, 0
    %v235 = vsel %vm94, %v218, 0
    %237 = vmatpush.msra.mxu0 0.0
    %238 = vmatpush.msra.mxu0 0.0
    %239 = vmatpush.msra.mxu0 0.0
    %240 = vmatpush.msra.mxu0 0.0
    %241 = vmatpush.msra.mxu0 0.0
    %242 = vmatpush.msra.mxu0 0.0
    %243 = vmatpush.msra.mxu0 0.0
    %244 = vmatpush.msra.mxu0 0.0
    %245 = vmatpush.msra.mxu0 0.0
    %246 = vmatpush.msra.mxu0 0.0
    %247 = vmatpush.msra.mxu0 0.0
    %248 = vmatpush.msra.mxu0 0.0
    %249 = vmatpush.msra.mxu0 %v232
    %250 = vmatpush.msra.mxu0 %v215
    %251 = vmatpush.msra.mxu0 %v213
    %252 = vmatpush.msra.mxu0 %v211
    %253 = vmatmul.f32.gmra.mxu0 %v219
    %v254 = vpop.f32.mrf.mxu0
    %v255 = vadd.f32 0.0, %v254
    %256 = vmatmul.f32.gmra.mxu0 %v221
    %v257 = vpop.f32.mrf.mxu0
    %v258 = vadd.f32 0.0, %v257
    %259 = vmatmul.f32.gmra.mxu0 %v223
    %v260 = vpop.f32.mrf.mxu0
    %v261 = vadd.f32 0.0, %v260
    %262 = vmatmul.f32.gmra.mxu0 %v225
    %v263 = vpop.f32.mrf.mxu0
    %v264 = vadd.f32 0.0, %v263
    %265 = vmatmul.f32.gmra.mxu0 %v227
    %v266 = vpop.f32.mrf.mxu0
    %v267 = vadd.f32 0.0, %v266
    %268 = vmatmul.f32.gmra.mxu0 %v229
    %v269 = vpop.f32.mrf.mxu0
    %v270 = vadd.f32 0.0, %v269
    %271 = vdwg.mxu0
    %272 = vmatpush.msra.mxu0 0.0
    %273 = vmatpush.msra.mxu0 0.0
    %274 = vmatpush.msra.mxu0 0.0
    %275 = vmatpush.msra.mxu0 0.0
    %276 = vmatpush.msra.mxu0 0.0
    %277 = vmatpush.msra.mxu0 0.0
    %278 = vmatpush.msra.mxu0 0.0
    %279 = vmatpush.msra.mxu0 0.0
    %280 = vmatpush.msra.mxu0 0.0
    %281 = vmatpush.msra.mxu0 0.0
    %282 = vmatpush.msra.mxu0 0.0
    %283 = vmatpush.msra.mxu0 0.0
    %284 = vmatpush.msra.mxu0 %v235
    %285 = vmatpush.msra.mxu0 %v216
    %286 = vmatpush.msra.mxu0 %v214
    %287 = vmatpush.msra.mxu0 %v212
    %288 = vmatmul.f32.gmra.mxu0 %v219
    %v289 = vpop.f32.mrf.mxu0
    %v290 = vadd.f32 0.0, %v289
    %291 = vmatmul.f32.gmra.mxu0 %v221
    %v292 = vpop.f32.mrf.mxu0
    %v293 = vadd.f32 0.0, %v292
    %294 = vmatmul.f32.gmra.mxu0 %v223
    %v295 = vpop.f32.mrf.mxu0
    %v296 = vadd.f32 0.0, %v295
    %297 = vmatmul.f32.gmra.mxu0 %v225
    %v298 = vpop.f32.mrf.mxu0
    %v299 = vadd.f32 0.0, %v298
    %300 = vmatmul.f32.gmra.mxu0 %v227
    %v301 = vpop.f32.mrf.mxu0
    %v302 = vadd.f32 0.0, %v301
    %303 = vmatmul.f32.gmra.mxu0 %v229
    %v304 = vpop.f32.mrf.mxu0
    %v305 = vadd.f32 0.0, %v304
    %306 = vdwg.mxu0
    %v307 = vrot.slane %v33, 4
    %v308 = vrot.slane %v34, 4
    %v309 = vsel %vm94, %v307, %v308
    %v310 = vrot.slane %v35, 4
    %v311 = vsel %vm94, %v308, %v310
    %v312 = vrot.slane %v36, 4
    %v313 = vsel %vm94, %v310, %v312
    %v314 = vrot.slane %v37, 4
    %v315 = vrot.slane %v38, 4
    %v316 = vsel %vm94, %v314, %v315
    %v317 = vrot.slane %v39, 4
    %v318 = vsel %vm94, %v315, %v317
    %v319 = vrot.slane %v40, 4
    %v320 = vsel %vm94, %v317, %v319
    %s321 = scalar_lea.vmem %s1, 256
    %v322 = vld [vmem:[%s321] sm:$0xff]
    %v323 = vld [vmem:[%s321 + $0x8] sm:$0xff]
    %v324 = vld [vmem:[%s321 + $0x10] sm:$0xff]
    %v325 = vld [vmem:[%s321 + $0x18] sm:$0xff]
    %v326 = vld [vmem:[%s321 + $0x20] sm:$0xff]
    %v327 = vld [vmem:[%s321 + $0x28] sm:$0xff]
    %v328 = vld [vmem:[%s321 + $0x30] sm:$0xf]
    %v329 = vld [vmem:[%s321 + $0x38] sm:$0xf]
    %v330 = vsel %vm81, %v309, 0
    %v332 = vsel %vm81, %v311, 0
    %v334 = vsel %vm81, %v313, 0
    %v336 = vsel %vm81, %v316, 0
    %v338 = vsel %vm81, %v318, 0
    %v340 = vsel %vm81, %v320, 0
    %v343 = vsel %vm94, %v328, 0
    %v346 = vsel %vm94, %v329, 0
    %348 = vmatpush.msra.mxu0 0.0
    %349 = vmatpush.msra.mxu0 0.0
    %350 = vmatpush.msra.mxu0 0.0
    %351 = vmatpush.msra.mxu0 0.0
    %352 = vmatpush.msra.mxu0 0.0
    %353 = vmatpush.msra.mxu0 0.0
    %354 = vmatpush.msra.mxu0 0.0
    %355 = vmatpush.msra.mxu0 0.0
    %356 = vmatpush.msra.mxu0 0.0
    %357 = vmatpush.msra.mxu0 0.0
    %358 = vmatpush.msra.mxu0 0.0
    %359 = vmatpush.msra.mxu0 0.0
    %360 = vmatpush.msra.mxu0 %v343
    %361 = vmatpush.msra.mxu0 %v326
    %362 = vmatpush.msra.mxu0 %v324
    %363 = vmatpush.msra.mxu0 %v322
    %364 = vmatmul.f32.gmra.mxu0 %v330
    %v365 = vpop.f32.mrf.mxu0
    %v366 = vadd.f32 0.0, %v365
    %367 = vmatmul.f32.gmra.mxu0 %v332
    %v368 = vpop.f32.mrf.mxu0
    %v369 = vadd.f32 0.0, %v368
    %370 = vmatmul.f32.gmra.mxu0 %v334
    %v371 = vpop.f32.mrf.mxu0
    %v372 = vadd.f32 0.0, %v371
    %373 = vmatmul.f32.gmra.mxu0 %v336
    %v374 = vpop.f32.mrf.mxu0
    %v375 = vadd.f32 0.0, %v374
    %376 = vmatmul.f32.gmra.mxu0 %v338
    %v377 = vpop.f32.mrf.mxu0
    %v378 = vadd.f32 0.0, %v377
    %379 = vmatmul.f32.gmra.mxu0 %v340
    %v380 = vpop.f32.mrf.mxu0
    %v381 = vadd.f32 0.0, %v380
    %382 = vdwg.mxu0
    %383 = vmatpush.msra.mxu0 0.0
    %384 = vmatpush.msra.mxu0 0.0
    %385 = vmatpush.msra.mxu0 0.0
    %386 = vmatpush.msra.mxu0 0.0
    %387 = vmatpush.msra.mxu0 0.0
    %388 = vmatpush.msra.mxu0 0.0
    %389 = vmatpush.msra.mxu0 0.0
    %390 = vmatpush.msra.mxu0 0.0
    %391 = vmatpush.msra.mxu0 0.0
    %392 = vmatpush.msra.mxu0 0.0
    %393 = vmatpush.msra.mxu0 0.0
    %394 = vmatpush.msra.mxu0 0.0
    %395 = vmatpush.msra.mxu0 %v346
    %396 = vmatpush.msra.mxu0 %v327
    %397 = vmatpush.msra.mxu0 %v325
    %398 = vmatpush.msra.mxu0 %v323
    %399 = vmatmul.f32.gmra.mxu0 %v330
    %v400 = vpop.f32.mrf.mxu0
    %v401 = vadd.f32 0.0, %v400
    %402 = vmatmul.f32.gmra.mxu0 %v332
    %v403 = vpop.f32.mrf.mxu0
    %v404 = vadd.f32 0.0, %v403
    %405 = vmatmul.f32.gmra.mxu0 %v334
    %v406 = vpop.f32.mrf.mxu0
    %v407 = vadd.f32 0.0, %v406
    %408 = vmatmul.f32.gmra.mxu0 %v336
    %v409 = vpop.f32.mrf.mxu0
    %v410 = vadd.f32 0.0, %v409
    %411 = vmatmul.f32.gmra.mxu0 %v338
    %v412 = vpop.f32.mrf.mxu0
    %v413 = vadd.f32 0.0, %v412
    %414 = vmatmul.f32.gmra.mxu0 %v340
    %v415 = vpop.f32.mrf.mxu0
    %v416 = vadd.f32 0.0, %v415
    %417 = vdwg.mxu0
    %v418 = vsel %vm81, %v33, 0
    %v420 = vsel %vm81, %v34, 0
    %v422 = vsel %vm81, %v35, 0
    %v424 = vsel %vm81, %v37, 0
    %v426 = vsel %vm81, %v38, 0
    %v428 = vsel %vm81, %v39, 0
    %v431 = vsel %vm94, %v47, 0
    %v434 = vsel %vm94, %v48, 0
    %436 = vmatpush.msra.mxu0 0.0
    %437 = vmatpush.msra.mxu0 0.0
    %438 = vmatpush.msra.mxu0 0.0
    %439 = vmatpush.msra.mxu0 0.0
    %440 = vmatpush.msra.mxu0 0.0
    %441 = vmatpush.msra.mxu0 0.0
    %442 = vmatpush.msra.mxu0 0.0
    %443 = vmatpush.msra.mxu0 0.0
    %444 = vmatpush.msra.mxu0 0.0
    %445 = vmatpush.msra.mxu0 0.0
    %446 = vmatpush.msra.mxu0 0.0
    %447 = vmatpush.msra.mxu0 0.0
    %448 = vmatpush.msra.mxu0 %v431
    %449 = vmatpush.msra.mxu0 %v45
    %450 = vmatpush.msra.mxu0 %v43
    %451 = vmatpush.msra.mxu0 %v41
    %452 = vmatmul.f32.gmra.mxu0 %v418
    %v453 = vpop.f32.mrf.mxu0
    %v454 = vadd.f32 %v119, %v453
    %455 = vmatmul.f32.gmra.mxu0 %v420
    %v456 = vpop.f32.mrf.mxu0
    %v457 = vadd.f32 %v122, %v456
    %458 = vmatmul.f32.gmra.mxu0 %v422
    %v459 = vpop.f32.mrf.mxu0
    %v460 = vadd.f32 %v125, %v459
    %461 = vmatmul.f32.gmra.mxu0 %v424
    %v462 = vpop.f32.mrf.mxu0
    %v463 = vadd.f32 %v128, %v462
    %464 = vmatmul.f32.gmra.mxu0 %v426
    %v465 = vpop.f32.mrf.mxu0
    %v466 = vadd.f32 %v131, %v465
    %467 = vmatmul.f32.gmra.mxu0 %v428
    %v468 = vpop.f32.mrf.mxu0
    %v469 = vadd.f32 %v134, %v468
    %470 = vdwg.mxu0
    %471 = vmatpush.msra.mxu0 0.0
    %472 = vmatpush.msra.mxu0 0.0
    %473 = vmatpush.msra.mxu0 0.0
    %474 = vmatpush.msra.mxu0 0.0
    %475 = vmatpush.msra.mxu0 0.0
    %476 = vmatpush.msra.mxu0 0.0
    %477 = vmatpush.msra.mxu0 0.0
    %478 = vmatpush.msra.mxu0 0.0
    %479 = vmatpush.msra.mxu0 0.0
    %480 = vmatpush.msra.mxu0 0.0
    %481 = vmatpush.msra.mxu0 0.0
    %482 = vmatpush.msra.mxu0 0.0
    %483 = vmatpush.msra.mxu0 %v434
    %484 = vmatpush.msra.mxu0 %v46
    %485 = vmatpush.msra.mxu0 %v44
    %486 = vmatpush.msra.mxu0 %v42
    %487 = vmatmul.f32.gmra.mxu0 %v418
    %v488 = vpop.f32.mrf.mxu0
    %v489 = vadd.f32 %v154, %v488
    %490 = vmatmul.f32.gmra.mxu0 %v420
    %v491 = vpop.f32.mrf.mxu0
    %v492 = vadd.f32 %v157, %v491
    %493 = vmatmul.f32.gmra.mxu0 %v422
    %v494 = vpop.f32.mrf.mxu0
    %v495 = vadd.f32 %v160, %v494
    %496 = vmatmul.f32.gmra.mxu0 %v424
    %v497 = vpop.f32.mrf.mxu0
    %v498 = vadd.f32 %v163, %v497
    %499 = vmatmul.f32.gmra.mxu0 %v426
    %v500 = vpop.f32.mrf.mxu0
    %v501 = vadd.f32 %v166, %v500
    %502 = vmatmul.f32.gmra.mxu0 %v428
    %v503 = vpop.f32.mrf.mxu0
    %v504 = vadd.f32 %v169, %v503
    %505 = vdwg.mxu0
    %v506 = vsel %vm81, %v174, 0
    %v508 = vsel %vm81, %v176, 0
    %v510 = vsel %vm81, %v178, 0
    %v512 = vsel %vm81, %v181, 0
    %v514 = vsel %vm81, %v183, 0
    %v516 = vsel %vm81, %v185, 0
    %v519 = vsel %vm94, %v193, 0
    %v522 = vsel %vm94, %v194, 0
    %524 = vmatpush.msra.mxu0 0.0
    %525 = vmatpush.msra.mxu0 0.0
    %526 = vmatpush.msra.mxu0 0.0
    %527 = vmatpush.msra.mxu0 0.0
    %528 = vmatpush.msra.mxu0 0.0
    %529 = vmatpush.msra.mxu0 0.0
    %530 = vmatpush.msra.mxu0 0.0
    %531 = vmatpush.msra.mxu0 0.0
    %532 = vmatpush.msra.mxu0 0.0
    %533 = vmatpush.msra.mxu0 0.0
    %534 = vmatpush.msra.mxu0 0.0
    %535 = vmatpush.msra.mxu0 0.0
    %536 = vmatpush.msra.mxu0 %v519
    %537 = vmatpush.msra.mxu0 %v191
    %538 = vmatpush.msra.mxu0 %v189
    %539 = vmatpush.msra.mxu0 %v187
    %540 = vmatmul.f32.gmra.mxu0 %v506
    %v541 = vpop.f32.mrf.mxu0
    %v542 = vadd.f32 %v255, %v541
    %543 = vmatmul.f32.gmra.mxu0 %v508
    %v544 = vpop.f32.mrf.mxu0
    %v545 = vadd.f32 %v258, %v544
    %546 = vmatmul.f32.gmra.mxu0 %v510
    %v547 = vpop.f32.mrf.mxu0
    %v548 = vadd.f32 %v261, %v547
    %549 = vmatmul.f32.gmra.mxu0 %v512
    %v550 = vpop.f32.mrf.mxu0
    %v551 = vadd.f32 %v264, %v550
    %552 = vmatmul.f32.gmra.mxu0 %v514
    %v553 = vpop.f32.mrf.mxu0
    %v554 = vadd.f32 %v267, %v553
    %555 = vmatmul.f32.gmra.mxu0 %v516
    %v556 = vpop.f32.mrf.mxu0
    %v557 = vadd.f32 %v270, %v556
    %558 = vdwg.mxu0
    %559 = vmatpush.msra.mxu0 0.0
    %560 = vmatpush.msra.mxu0 0.0
    %561 = vmatpush.msra.mxu0 0.0
    %562 = vmatpush.msra.mxu0 0.0
    %563 = vmatpush.msra.mxu0 0.0
    %564 = vmatpush.msra.mxu0 0.0
    %565 = vmatpush.msra.mxu0 0.0
    %566 = vmatpush.msra.mxu0 0.0
    %567 = vmatpush.msra.mxu0 0.0
    %568 = vmatpush.msra.mxu0 0.0
    %569 = vmatpush.msra.mxu0 0.0
    %570 = vmatpush.msra.mxu0 0.0
    %571 = vmatpush.msra.mxu0 %v522
    %572 = vmatpush.msra.mxu0 %v192
    %573 = vmatpush.msra.mxu0 %v190
    %574 = vmatpush.msra.mxu0 %v188
    %575 = vmatmul.f32.gmra.mxu0 %v506
    %v576 = vpop.f32.mrf.mxu0
    %v577 = vadd.f32 %v290, %v576
    %578 = vmatmul.f32.gmra.mxu0 %v508
    %v579 = vpop.f32.mrf.mxu0
    %v580 = vadd.f32 %v293, %v579
    %581 = vmatmul.f32.gmra.mxu0 %v510
    %v582 = vpop.f32.mrf.mxu0
    %v583 = vadd.f32 %v296, %v582
    %584 = vmatmul.f32.gmra.mxu0 %v512
    %v585 = vpop.f32.mrf.mxu0
    %v586 = vadd.f32 %v299, %v585
    %587 = vmatmul.f32.gmra.mxu0 %v514
    %v588 = vpop.f32.mrf.mxu0
    %v589 = vadd.f32 %v302, %v588
    %590 = vmatmul.f32.gmra.mxu0 %v516
    %v591 = vpop.f32.mrf.mxu0
    %v592 = vadd.f32 %v305, %v591
    %593 = vdwg.mxu0
    %v594 = vadd.f32 %v454, %v542
    %v595 = vadd.f32 %v489, %v577
    %v596 = vadd.f32 %v457, %v545
    %v597 = vadd.f32 %v492, %v580
    %v598 = vadd.f32 %v460, %v548
    %v599 = vadd.f32 %v495, %v583
    %v600 = vadd.f32 %v463, %v551
    %v601 = vadd.f32 %v498, %v586
    %v602 = vadd.f32 %v466, %v554
    %v603 = vadd.f32 %v501, %v589
    %v604 = vadd.f32 %v469, %v557
    %v605 = vadd.f32 %v504, %v592
    %v606 = vadd.f32 %v594, %v366
    %v607 = vadd.f32 %v595, %v401
    %v608 = vadd.f32 %v596, %v369
    %v609 = vadd.f32 %v597, %v404
    %v610 = vadd.f32 %v598, %v372
    %v611 = vadd.f32 %v599, %v407
    %v612 = vadd.f32 %v600, %v375
    %v613 = vadd.f32 %v601, %v410
    %v614 = vadd.f32 %v602, %v378
    %v615 = vadd.f32 %v603, %v413
    %v616 = vadd.f32 %v604, %v381
    %v617 = vadd.f32 %v605, %v416
    %v630 = vrot.slane %v607, 6
    %v631 = vrot.slane %v609, 6
    %v632 = vrot.slane %v611, 6
    %v633 = vrot.slane %v613, 6
    %v634 = vrot.slane %v615, 6
    %v635 = vrot.slane %v617, 6
    %vm636 = vcmask 1041408
    %v637 = vsel %vm636, %v606, %v630
    %vm638 = vcmask 1043458
    %v639 = vsel %vm638, %v606, %v630
    %v640 = vrot.slane %v639, 2
    %vm641 = vcmask 1045508
    %v642 = vsel %vm641, %v606, %v630
    %v643 = vrot.slane %v642, 4
    %v644 = vsel %vm171, %v630, %v606
    %v645 = vrot.slane %v644, 6
    %v646 = vsel %vm636, %v608, %v631
    %v647 = vsel %vm638, %v608, %v631
    %v648 = vrot.slane %v647, 2
    %v649 = vsel %vm641, %v608, %v631
    %v650 = vrot.slane %v649, 4
    %v651 = vsel %vm171, %v631, %v608
    %v652 = vrot.slane %v651, 6
    %v653 = vsel %vm636, %v610, %v632
    %v654 = vsel %vm638, %v610, %v632
    %v655 = vrot.slane %v654, 2
    %v656 = vsel %vm641, %v610, %v632
    %v657 = vrot.slane %v656, 4
    %v658 = vsel %vm171, %v632, %v610
    %v659 = vrot.slane %v658, 6
    %v660 = vsel %vm636, %v612, %v633
    %v661 = vsel %vm638, %v612, %v633
    %v662 = vrot.slane %v661, 2
    %v663 = vsel %vm641, %v612, %v633
    %v664 = vrot.slane %v663, 4
    %v665 = vsel %vm171, %v633, %v612
    %v666 = vrot.slane %v665, 6
    %v667 = vsel %vm636, %v614, %v634
    %v668 = vsel %vm638, %v614, %v634
    %v669 = vrot.slane %v668, 2
    %v670 = vsel %vm641, %v614, %v634
    %v671 = vrot.slane %v670, 4
    %v672 = vsel %vm171, %v634, %v614
    %v673 = vrot.slane %v672, 6
    %v674 = vsel %vm636, %v616, %v635
    %v675 = vsel %vm638, %v616, %v635
    %v676 = vrot.slane %v675, 2
    %v677 = vsel %vm641, %v616, %v635
    %v678 = vrot.slane %v677, 4
    %v679 = vsel %vm171, %v635, %v616
    %v680 = vrot.slane %v679, 6
    %v705 = vrot.slane %v637, 7
    %v706 = vrot.slane %v705, 2
    %v707 = vrot.slane %v640, 7
    %v708 = vrot.slane %v707, 2
    %v709 = vrot.slane %v643, 7
    %v710 = vrot.slane %v709, 2
    %v711 = vrot.slane %v645, 7
    %v712 = vrot.slane %v711, 2
    %v713 = vrot.slane %v646, 7
    %v714 = vrot.slane %v713, 2
    %v715 = vrot.slane %v648, 7
    %v716 = vrot.slane %v715, 2
    %v717 = vrot.slane %v650, 7
    %v718 = vrot.slane %v717, 2
    %v719 = vrot.slane %v652, 7
    %v720 = vrot.slane %v719, 2
    %v721 = vrot.slane %v653, 7
    %v722 = vrot.slane %v721, 2
    %v723 = vrot.slane %v655, 7
    %v724 = vrot.slane %v723, 2
    %v725 = vrot.slane %v657, 7
    %v726 = vrot.slane %v725, 2
    %v727 = vrot.slane %v659, 7
    %v728 = vrot.slane %v727, 2
    %v729 = vrot.slane %v660, 7
    %v730 = vrot.slane %v729, 2
    %v731 = vrot.slane %v662, 7
    %v732 = vrot.slane %v731, 2
    %v733 = vrot.slane %v664, 7
    %v734 = vrot.slane %v733, 2
    %v735 = vrot.slane %v666, 7
    %v736 = vrot.slane %v735, 2
    %v737 = vrot.slane %v667, 7
    %v738 = vrot.slane %v737, 2
    %v739 = vrot.slane %v669, 7
    %v740 = vrot.slane %v739, 2
    %v741 = vrot.slane %v671, 7
    %v742 = vrot.slane %v741, 2
    %v743 = vrot.slane %v673, 7
    %v744 = vrot.slane %v743, 2
    %v745 = vrot.slane %v674, 7
    %v746 = vrot.slane %v745, 2
    %v747 = vrot.slane %v676, 7
    %v748 = vrot.slane %v747, 2
    %v749 = vrot.slane %v678, 7
    %v750 = vrot.slane %v749, 2
    %v751 = vrot.slane %v680, 7
    %v752 = vrot.slane %v751, 2
    %v777 = vmax.f32 %v637, %v706
    %v778 = vmax.f32 %v640, %v708
    %v779 = vmax.f32 %v643, %v710
    %v780 = vmax.f32 %v645, %v712
    %v781 = vmax.f32 %v646, %v714
    %v782 = vmax.f32 %v648, %v716
    %v783 = vmax.f32 %v650, %v718
    %v784 = vmax.f32 %v652, %v720
    %v785 = vmax.f32 %v653, %v722
    %v786 = vmax.f32 %v655, %v724
    %v787 = vmax.f32 %v657, %v726
    %v788 = vmax.f32 %v659, %v728
    %v789 = vmax.f32 %v660, %v730
    %v790 = vmax.f32 %v662, %v732
    %v791 = vmax.f32 %v664, %v734
    %v792 = vmax.f32 %v666, %v736
    %v793 = vmax.f32 %v667, %v738
    %v794 = vmax.f32 %v669, %v740
    %v795 = vmax.f32 %v671, %v742
    %v796 = vmax.f32 %v673, %v744
    %v797 = vmax.f32 %v674, %v746
    %v798 = vmax.f32 %v676, %v748
    %v799 = vmax.f32 %v678, %v750
    %v800 = vmax.f32 %v680, %v752
    %825 = vrot.lane.b32.xlu0 %v777, 8
    %v826 = vpop.permute.xlu0 %825
    %827 = vrot.lane.b32.xlu0 %v778, 8
    %v828 = vpop.permute.xlu0 %827
    %829 = vrot.lane.b32.xlu0 %v779, 8
    %v830 = vpop.permute.xlu0 %829
    %831 = vrot.lane.b32.xlu0 %v780, 8
    %v832 = vpop.permute.xlu0 %831
    %833 = vrot.lane.b32.xlu0 %v781, 8
    %v834 = vpop.permute.xlu0 %833
    %835 = vrot.lane.b32.xlu0 %v782, 8
    %v836 = vpop.permute.xlu0 %835
    %837 = vrot.lane.b32.xlu0 %v783, 8
    %v838 = vpop.permute.xlu0 %837
    %839 = vrot.lane.b32.xlu0 %v784, 8
    %v840 = vpop.permute.xlu0 %839
    %841 = vrot.lane.b32.xlu0 %v785, 8
    %v842 = vpop.permute.xlu0 %841
    %843 = vrot.lane.b32.xlu0 %v786, 8
    %v844 = vpop.permute.xlu0 %843
    %845 = vrot.lane.b32.xlu0 %v787, 8
    %v846 = vpop.permute.xlu0 %845
    %847 = vrot.lane.b32.xlu0 %v788, 8
    %v848 = vpop.permute.xlu0 %847
    %849 = vrot.lane.b32.xlu0 %v789, 8
    %v850 = vpop.permute.xlu0 %849
    %851 = vrot.lane.b32.xlu0 %v790, 8
    %v852 = vpop.permute.xlu0 %851
    %853 = vrot.lane.b32.xlu0 %v791, 8
    %v854 = vpop.permute.xlu0 %853
    %855 = vrot.lane.b32.xlu0 %v792, 8
    %v856 = vpop.permute.xlu0 %855
    %857 = vrot.lane.b32.xlu0 %v793, 8
    %v858 = vpop.permute.xlu0 %857
    %859 = vrot.lane.b32.xlu0 %v794, 8
    %v860 = vpop.permute.xlu0 %859
    %861 = vrot.lane.b32.xlu0 %v795, 8
    %v862 = vpop.permute.xlu0 %861
    %863 = vrot.lane.b32.xlu0 %v796, 8
    %v864 = vpop.permute.xlu0 %863
    %865 = vrot.lane.b32.xlu0 %v797, 8
    %v866 = vpop.permute.xlu0 %865
    %867 = vrot.lane.b32.xlu0 %v798, 8
    %v868 = vpop.permute.xlu0 %867
    %869 = vrot.lane.b32.xlu0 %v799, 8
    %v870 = vpop.permute.xlu0 %869
    %871 = vrot.lane.b32.xlu0 %v800, 8
    %v872 = vpop.permute.xlu0 %871
    %v873 = vrot.slane %v826, 2
    %v874 = vrot.slane %v828, 2
    %v875 = vrot.slane %v830, 2
    %v876 = vrot.slane %v832, 2
    %v877 = vrot.slane %v834, 2
    %v878 = vrot.slane %v836, 2
    %v879 = vrot.slane %v838, 2
    %v880 = vrot.slane %v840, 2
    %v881 = vrot.slane %v842, 2
    %v882 = vrot.slane %v844, 2
    %v883 = vrot.slane %v846, 2
    %v884 = vrot.slane %v848, 2
    %v885 = vrot.slane %v850, 2
    %v886 = vrot.slane %v852, 2
    %v887 = vrot.slane %v854, 2
    %v888 = vrot.slane %v856, 2
    %v889 = vrot.slane %v858, 2
    %v890 = vrot.slane %v860, 2
    %v891 = vrot.slane %v862, 2
    %v892 = vrot.slane %v864, 2
    %v893 = vrot.slane %v866, 2
    %v894 = vrot.slane %v868, 2
    %v895 = vrot.slane %v870, 2
    %v896 = vrot.slane %v872, 2
    %vm897 = vcmask 64512
    %v898 = vsel %vm897, %v826, %v873
    %v899 = vsel %vm897, %v828, %v874
    %v900 = vsel %vm897, %v830, %v875
    %v901 = vsel %vm897, %v832, %v876
    %v902 = vsel %vm897, %v834, %v877
    %v903 = vsel %vm897, %v836, %v878
    %v904 = vsel %vm897, %v838, %v879
    %v905 = vsel %vm897, %v840, %v880
    %v906 = vsel %vm897, %v842, %v881
    %v907 = vsel %vm897, %v844, %v882
    %v908 = vsel %vm897, %v846, %v883
    %v909 = vsel %vm897, %v848, %v884
    %v910 = vsel %vm897, %v850, %v885
    %v911 = vsel %vm897, %v852, %v886
    %v912 = vsel %vm897, %v854, %v887
    %v913 = vsel %vm897, %v856, %v888
    %v914 = vsel %vm897, %v858, %v889
    %v915 = vsel %vm897, %v860, %v890
    %v916 = vsel %vm897, %v862, %v891
    %v917 = vsel %vm897, %v864, %v892
    %v918 = vsel %vm897, %v866, %v893
    %v919 = vsel %vm897, %v868, %v894
    %v920 = vsel %vm897, %v870, %v895
    %v921 = vsel %vm897, %v872, %v896
    %v946 = vmax.f32 %v777, %v898
    %v947 = vmax.f32 %v778, %v899
    %v948 = vmax.f32 %v779, %v900
    %v949 = vmax.f32 %v780, %v901
    %v950 = vmax.f32 %v781, %v902
    %v951 = vmax.f32 %v782, %v903
    %v952 = vmax.f32 %v783, %v904
    %v953 = vmax.f32 %v784, %v905
    %v954 = vmax.f32 %v785, %v906
    %v955 = vmax.f32 %v786, %v907
    %v956 = vmax.f32 %v787, %v908
    %v957 = vmax.f32 %v788, %v909
    %v958 = vmax.f32 %v789, %v910
    %v959 = vmax.f32 %v790, %v911
    %v960 = vmax.f32 %v791, %v912
    %v961 = vmax.f32 %v792, %v913
    %v962 = vmax.f32 %v793, %v914
    %v963 = vmax.f32 %v794, %v915
    %v964 = vmax.f32 %v795, %v916
    %v965 = vmax.f32 %v796, %v917
    %v966 = vmax.f32 %v797, %v918
    %v967 = vmax.f32 %v798, %v919
    %v968 = vmax.f32 %v799, %v920
    %v969 = vmax.f32 %v800, %v921
    %v970 = vld [vmem:[%s2] sm:$0x1]
    %v972 = vperm.slane %v970, 0
    %v973 = vrot.slane %v972, 2
    %v974 = vrot.slane %v972, 4
    %v975 = vrot.slane %v972, 6
    %v976 = vrot.slane %v972, 1
    %v977 = vrot.slane %v973, 1
    %v978 = vrot.slane %v974, 1
    %v979 = vrot.slane %v975, 1
    %v988 = vadd.f32 %v946, %v972
    %v989 = vadd.f32 %v947, %v976
    %v990 = vadd.f32 %v948, %v973
    %v991 = vadd.f32 %v949, %v977
    %v992 = vadd.f32 %v950, %v974
    %v993 = vadd.f32 %v951, %v978
    %v994 = vadd.f32 %v952, %v975
    %v995 = vadd.f32 %v953, %v979
    %v996 = vadd.f32 %v954, %v972
    %v997 = vadd.f32 %v955, %v976
    %v998 = vadd.f32 %v956, %v973
    %v999 = vadd.f32 %v957, %v977
    %v1000 = vadd.f32 %v958, %v972
    %v1001 = vadd.f32 %v959, %v976
    %v1002 = vadd.f32 %v960, %v973
    %v1003 = vadd.f32 %v961, %v977
    %v1004 = vadd.f32 %v962, %v974
    %v1005 = vadd.f32 %v963, %v978
    %v1006 = vadd.f32 %v964, %v975
    %v1007 = vadd.f32 %v965, %v979
    %v1008 = vadd.f32 %v966, %v972
    %v1009 = vadd.f32 %v967, %v976
    %v1010 = vadd.f32 %v968, %v973
    %v1011 = vadd.f32 %v969, %v977
    %v1012 = vmax.f32 %v988, 0.0
    %v1013 = vmax.f32 %v989, 0.0
    %v1014 = vmax.f32 %v990, 0.0
    %v1015 = vmax.f32 %v991, 0.0
    %v1016 = vmax.f32 %v992, 0.0
    %v1017 = vmax.f32 %v993, 0.0
    %v1018 = vmax.f32 %v994, 0.0
    %v1019 = vmax.f32 %v995, 0.0
    %v1020 = vmax.f32 %v996, 0.0
    %v1021 = vmax.f32 %v997, 0.0
    %v1022 = vmax.f32 %v998, 0.0
    %v1023 = vmax.f32 %v999, 0.0
    %v1024 = vmax.f32 %v1000, 0.0
    %v1025 = vmax.f32 %v1001, 0.0
    %v1026 = vmax.f32 %v1002, 0.0
    %v1027 = vmax.f32 %v1003, 0.0
    %v1028 = vmax.f32 %v1004, 0.0
    %v1029 = vmax.f32 %v1005, 0.0
    %v1030 = vmax.f32 %v1006, 0.0
    %v1031 = vmax.f32 %v1007, 0.0
    %v1032 = vmax.f32 %v1008, 0.0
    %v1033 = vmax.f32 %v1009, 0.0
    %v1034 = vmax.f32 %v1010, 0.0
    %v1035 = vmax.f32 %v1011, 0.0
    %v1036 = vld [vmem:[%s3] sm:$0xff]
    %v1037 = vld [vmem:[%s3 + $0x8] sm:$0xff]
    %v1038 = vld [vmem:[%s3 + $0x10] sm:$0xff]
    %v1039 = vld [vmem:[%s3 + $0x18] sm:$0xff]
    %v1040 = vld [vmem:[%s3 + $0x20] sm:$0xff]
    %v1041 = vld [vmem:[%s3 + $0x28] sm:$0xff]
    %v1042 = vld [vmem:[%s3 + $0x30] sm:$0xff]
    %v1043 = vld [vmem:[%s3 + $0x38] sm:$0xff]
    %v1044 = vld [vmem:[%s3 + $0x40] sm:$0xff]
    %v1045 = vld [vmem:[%s3 + $0x48] sm:$0xff]
    %v1046 = vld [vmem:[%s3 + $0x50] sm:$0xff]
    %v1047 = vld [vmem:[%s3 + $0x58] sm:$0xff]
    %v1048 = vld [vmem:[%s3 + $0x60] sm:$0xff]
    %v1049 = vld [vmem:[%s3 + $0x68] sm:$0xff]
    %v1050 = vld [vmem:[%s3 + $0x70] sm:$0xff]
    %v1051 = vld [vmem:[%s3 + $0x78] sm:$0xff]
    %v1052 = vld [vmem:[%s3 + $0x80] sm:$0xff]
    %v1053 = vld [vmem:[%s3 + $0x88] sm:$0xff]
    %v1054 = vld [vmem:[%s3 + $0x90] sm:$0xff]
    %v1055 = vld [vmem:[%s3 + $0x98] sm:$0xff]
    %v1056 = vld [vmem:[%s3 + $0xa0] sm:$0xff]
    %v1057 = vld [vmem:[%s3 + $0xa8] sm:$0xff]
    %v1058 = vld [vmem:[%s3 + $0xb0] sm:$0xff]
    %v1059 = vld [vmem:[%s3 + $0xb8] sm:$0xff]
    %v1060 = vld [vmem:[%s3 + $0xc0] sm:$0xff]
    %v1061 = vld [vmem:[%s3 + $0xc8] sm:$0xff]
    %v1062 = vld [vmem:[%s3 + $0xd0] sm:$0xff]
    %v1063 = vld [vmem:[%s3 + $0xd8] sm:$0xff]
    %v1064 = vld [vmem:[%s3 + $0xe0] sm:$0xff]
    %v1065 = vld [vmem:[%s3 + $0xe8] sm:$0xff]
    %s1066 = scalar_lea.vmem %s3, 240
    %v1067 = vld [vmem:[%s1066] sm:$0xff]
    %v1068 = vld [vmem:[%s1066 + $0x8] sm:$0xff]
    %v1069 = vld [vmem:[%s1066 + $0x10] sm:$0xff]
    %v1070 = vld [vmem:[%s1066 + $0x18] sm:$0xff]
    %v1071 = vld [vmem:[%s1066 + $0x20] sm:$0xff]
    %v1072 = vld [vmem:[%s1066 + $0x28] sm:$0xff]
    %v1073 = vld [vmem:[%s1066 + $0x30] sm:$0xff]
    %v1074 = vld [vmem:[%s1066 + $0x38] sm:$0xff]
    %v1075 = vld [vmem:[%s1066 + $0x40] sm:$0xff]
    %v1076 = vld [vmem:[%s1066 + $0x48] sm:$0xff]
    %v1077 = vld [vmem:[%s1066 + $0x50] sm:$0xff]
    %v1078 = vld [vmem:[%s1066 + $0x58] sm:$0xff]
    %v1079 = vld [vmem:[%s1066 + $0x60] sm:$0xff]
    %v1080 = vld [vmem:[%s1066 + $0x68] sm:$0xff]
    %v1081 = vld [vmem:[%s1066 + $0x70] sm:$0xff]
    %v1082 = vld [vmem:[%s1066 + $0x78] sm:$0xff]
    %v1083 = vld [vmem:[%s1066 + $0x80] sm:$0xff]
    %v1084 = vld [vmem:[%s1066 + $0x88] sm:$0xff]
    %v1085 = vld [vmem:[%s1066 + $0x90] sm:$0xff]
    %v1086 = vld [vmem:[%s1066 + $0x98] sm:$0xff]
    %v1087 = vld [vmem:[%s1066 + $0xa0] sm:$0xff]
    %v1088 = vld [vmem:[%s1066 + $0xa8] sm:$0xff]
    %v1089 = vld [vmem:[%s1066 + $0xb0] sm:$0xff]
    %v1090 = vld [vmem:[%s1066 + $0xb8] sm:$0xff]
    %v1091 = vld [vmem:[%s1066 + $0xc0] sm:$0xff]
    %v1092 = vld [vmem:[%s1066 + $0xc8] sm:$0xff]
    %v1093 = vld [vmem:[%s1066 + $0xd0] sm:$0xff]
    %v1094 = vld [vmem:[%s1066 + $0xd8] sm:$0xff]
    %v1095 = vld [vmem:[%s1066 + $0xe0] sm:$0xff]
    %v1096 = vld [vmem:[%s1066 + $0xe8] sm:$0xff]
    %v1113 = vperm.slane %v1013, 0
    %v1114 = vperm.slane %v1014, 0
    %v1115 = vperm.slane %v1015, 0
    %v1116 = vperm.slane %v1016, 0
    %v1117 = vperm.slane %v1017, 0
    %v1118 = vperm.slane %v1018, 0
    %v1119 = vperm.slane %v1019, 0
    %v1120 = vperm.slane %v1020, 0
    %v1121 = vperm.slane %v1025, 0
    %v1122 = vperm.slane %v1026, 0
    %v1123 = vperm.slane %v1027, 0
    %v1124 = vperm.slane %v1028, 0
    %v1125 = vperm.slane %v1029, 0
    %v1126 = vperm.slane %v1030, 0
    %v1127 = vperm.slane %v1031, 0
    %v1128 = vperm.slane %v1032, 0
    %vm1129 = vcmask 1041409
    %v1130 = vsel %vm1129, %v1114, %v1113
    %vm1131 = vcmask 1042434
    %v1132 = vsel %vm1131, %v1115, %v1130
    %vm1133 = vcmask 1043459
    %v1134 = vsel %vm1133, %v1116, %v1132
    %vm1135 = vcmask 1044484
    %v1136 = vsel %vm1135, %v1117, %v1134
    %vm1137 = vcmask 1045509
    %v1138 = vsel %vm1137, %v1118, %v1136
    %vm1139 = vcmask 1046534
    %v1140 = vsel %vm1139, %v1119, %v1138
    %vm1141 = vcmask 1047559
    %v1142 = vsel %vm1141, %v1120, %v1140
    %v1143 = vsel %vm1129, %v1122, %v1121
    %v1144 = vsel %vm1131, %v1123, %v1143
    %v1145 = vsel %vm1133, %v1124, %v1144
    %v1146 = vsel %vm1135, %v1125, %v1145
    %v1147 = vsel %vm1137, %v1126, %v1146
    %v1148 = vsel %vm1139, %v1127, %v1147
    %v1149 = vsel %vm1141, %v1128, %v1148
    %vm1150 = vcmask 982016
    %v1151 = vsel %vm1150, %v1142, 0
    %v1153 = vsel %vm1150, %v1149, 0
    %1155 = vmatpush.msra.mxu0 0.0
    %1156 = vmatpush.msra.mxu0 %v1095
    %1157 = vmatpush.msra.mxu0 %v1093
    %1158 = vmatpush.msra.mxu0 %v1091
    %1159 = vmatpush.msra.mxu0 %v1089
    %1160 = vmatpush.msra.mxu0 %v1087
    %1161 = vmatpush.msra.mxu0 %v1085
    %1162 = vmatpush.msra.mxu0 %v1083
    %1163 = vmatpush.msra.mxu0 %v1081
    %1164 = vmatpush.msra.mxu0 %v1079
    %1165 = vmatpush.msra.mxu0 %v1077
    %1166 = vmatpush.msra.mxu0 %v1075
    %1167 = vmatpush.msra.mxu0 %v1073
    %1168 = vmatpush.msra.mxu0 %v1071
    %1169 = vmatpush.msra.mxu0 %v1069
    %1170 = vmatpush.msra.mxu0 %v1067
    %1171 = vmatmul.f32.gmra.mxu0 %v1151
    %v1172 = vpop.f32.mrf.mxu0
    %v1173 = vadd.f32 0.0, %v1172
    %1174 = vmatmul.f32.gmra.mxu0 %v1153
    %v1175 = vpop.f32.mrf.mxu0
    %v1176 = vadd.f32 0.0, %v1175
    %1177 = vdwg.mxu0
    %1178 = vmatpush.msra.mxu0 0.0
    %1179 = vmatpush.msra.mxu0 %v1096
    %1180 = vmatpush.msra.mxu0 %v1094
    %1181 = vmatpush.msra.mxu0 %v1092
    %1182 = vmatpush.msra.mxu0 %v1090
    %1183 = vmatpush.msra.mxu0 %v1088
    %1184 = vmatpush.msra.mxu0 %v1086
    %1185 = vmatpush.msra.mxu0 %v1084
    %1186 = vmatpush.msra.mxu0 %v1082
    %1187 = vmatpush.msra.mxu0 %v1080
    %1188 = vmatpush.msra.mxu0 %v1078
    %1189 = vmatpush.msra.mxu0 %v1076
    %1190 = vmatpush.msra.mxu0 %v1074
    %1191 = vmatpush.msra.mxu0 %v1072
    %1192 = vmatpush.msra.mxu0 %v1070
    %1193 = vmatpush.msra.mxu0 %v1068
    %1194 = vmatmul.f32.gmra.mxu0 %v1151
    %v1195 = vpop.f32.mrf.mxu0
    %v1196 = vadd.f32 0.0, %v1195
    %1197 = vmatmul.f32.gmra.mxu0 %v1153
    %v1198 = vpop.f32.mrf.mxu0
    %v1199 = vadd.f32 0.0, %v1198
    %1200 = vdwg.mxu0
    %s1201 = scalar_lea.vmem %s3, 480
    %v1202 = vld [vmem:[%s1201] sm:$0xff]
    %v1203 = vld [vmem:[%s1201 + $0x8] sm:$0xff]
    %v1204 = vld [vmem:[%s1201 + $0x10] sm:$0xff]
    %v1205 = vld [vmem:[%s1201 + $0x18] sm:$0xff]
    %v1206 = vld [vmem:[%s1201 + $0x20] sm:$0xff]
    %v1207 = vld [vmem:[%s1201 + $0x28] sm:$0xff]
    %v1208 = vld [vmem:[%s1201 + $0x30] sm:$0xff]
    %v1209 = vld [vmem:[%s1201 + $0x38] sm:$0xff]
    %v1210 = vld [vmem:[%s1201 + $0x40] sm:$0xff]
    %v1211 = vld [vmem:[%s1201 + $0x48] sm:$0xff]
    %v1212 = vld [vmem:[%s1201 + $0x50] sm:$0xff]
    %v1213 = vld [vmem:[%s1201 + $0x58] sm:$0xff]
    %v1214 = vld [vmem:[%s1201 + $0x60] sm:$0xff]
    %v1215 = vld [vmem:[%s1201 + $0x68] sm:$0xff]
    %v1216 = vld [vmem:[%s1201 + $0x70] sm:$0xff]
    %v1217 = vld [vmem:[%s1201 + $0x78] sm:$0xff]
    %v1218 = vld [vmem:[%s1201 + $0x80] sm:$0xff]
    %v1219 = vld [vmem:[%s1201 + $0x88] sm:$0xff]
    %v1220 = vld [vmem:[%s1201 + $0x90] sm:$0xff]
    %v1221 = vld [vmem:[%s1201 + $0x98] sm:$0xff]
    %v1222 = vld [vmem:[%s1201 + $0xa0] sm:$0xff]
    %v1223 = vld [vmem:[%s1201 + $0xa8] sm:$0xff]
    %v1224 = vld [vmem:[%s1201 + $0xb0] sm:$0xff]
    %v1225 = vld [vmem:[%s1201 + $0xb8] sm:$0xff]
    %v1226 = vld [vmem:[%s1201 + $0xc0] sm:$0xff]
    %v1227 = vld [vmem:[%s1201 + $0xc8] sm:$0xff]
    %v1228 = vld [vmem:[%s1201 + $0xd0] sm:$0xff]
    %v1229 = vld [vmem:[%s1201 + $0xd8] sm:$0xff]
    %v1230 = vld [vmem:[%s1201 + $0xe0] sm:$0xff]
    %v1231 = vld [vmem:[%s1201 + $0xe8] sm:$0xff]
    %s1232 = scalar_lea.vmem %s3, 720
    %v1233 = vld [vmem:[%s1232] sm:$0xff]
    %v1234 = vld [vmem:[%s1232 + $0x8] sm:$0xff]
    %v1235 = vld [vmem:[%s1232 + $0x10] sm:$0xff]
    %v1236 = vld [vmem:[%s1232 + $0x18] sm:$0xff]
    %v1237 = vld [vmem:[%s1232 + $0x20] sm:$0xff]
    %v1238 = vld [vmem:[%s1232 + $0x28] sm:$0xff]
    %v1239 = vld [vmem:[%s1232 + $0x30] sm:$0xff]
    %v1240 = vld [vmem:[%s1232 + $0x38] sm:$0xff]
    %v1241 = vld [vmem:[%s1232 + $0x40] sm:$0xff]
    %v1242 = vld [vmem:[%s1232 + $0x48] sm:$0xff]
    %v1243 = vld [vmem:[%s1232 + $0x50] sm:$0xff]
    %v1244 = vld [vmem:[%s1232 + $0x58] sm:$0xff]
    %v1245 = vld [vmem:[%s1232 + $0x60] sm:$0xff]
    %v1246 = vld [vmem:[%s1232 + $0x68] sm:$0xff]
    %v1247 = vld [vmem:[%s1232 + $0x70] sm:$0xff]
    %v1248 = vld [vmem:[%s1232 + $0x78] sm:$0xff]
    %v1249 = vld [vmem:[%s1232 + $0x80] sm:$0xff]
    %v1250 = vld [vmem:[%s1232 + $0x88] sm:$0xff]
    %v1251 = vld [vmem:[%s1232 + $0x90] sm:$0xff]
    %v1252 = vld [vmem:[%s1232 + $0x98] sm:$0xff]
    %v1253 = vld [vmem:[%s1232 + $0xa0] sm:$0xff]
    %v1254 = vld [vmem:[%s1232 + $0xa8] sm:$0xff]
    %v1255 = vld [vmem:[%s1232 + $0xb0] sm:$0xff]
    %v1256 = vld [vmem:[%s1232 + $0xb8] sm:$0xff]
    %v1257 = vld [vmem:[%s1232 + $0xc0] sm:$0xff]
    %v1258 = vld [vmem:[%s1232 + $0xc8] sm:$0xff]
    %v1259 = vld [vmem:[%s1232 + $0xd0] sm:$0xff]
    %v1260 = vld [vmem:[%s1232 + $0xd8] sm:$0xff]
    %v1261 = vld [vmem:[%s1232 + $0xe0] sm:$0xff]
    %v1262 = vld [vmem:[%s1232 + $0xe8] sm:$0xff]
    %v1267 = vperm.slane %v1021, 0
    %v1268 = vperm.slane %v1022, 0
    %v1269 = vperm.slane %v1033, 0
    %v1270 = vperm.slane %v1034, 0
    %v1271 = vsel %vm1129, %v1116, %v1115
    %v1272 = vsel %vm1131, %v1117, %v1271
    %v1273 = vsel %vm1133, %v1118, %v1272
    %v1274 = vsel %vm1135, %v1119, %v1273
    %v1275 = vsel %vm1137, %v1120, %v1274
    %v1276 = vsel %vm1139, %v1267, %v1275
    %v1277 = vsel %vm1141, %v1268, %v1276
    %v1278 = vsel %vm1129, %v1124, %v1123
    %v1279 = vsel %vm1131, %v1125, %v1278
    %v1280 = vsel %vm1133, %v1126, %v1279
    %v1281 = vsel %vm1135, %v1127, %v1280
    %v1282 = vsel %vm1137, %v1128, %v1281
    %v1283 = vsel %vm1139, %v1269, %v1282
    %v1284 = vsel %vm1141, %v1270, %v1283
    %v1285 = vsel %vm1150, %v1277, 0
    %v1287 = vsel %vm1150, %v1284, 0
    %1289 = vmatpush.msra.mxu0 0.0
    %1290 = vmatpush.msra.mxu0 %v1261
    %1291 = vmatpush.msra.mxu0 %v1259
    %1292 = vmatpush.msra.mxu0 %v1257
    %1293 = vmatpush.msra.mxu0 %v1255
    %1294 = vmatpush.msra.mxu0 %v1253
    %1295 = vmatpush.msra.mxu0 %v1251
    %1296 = vmatpush.msra.mxu0 %v1249
    %1297 = vmatpush.msra.mxu0 %v1247
    %1298 = vmatpush.msra.mxu0 %v1245
    %1299 = vmatpush.msra.mxu0 %v1243
    %1300 = vmatpush.msra.mxu0 %v1241
    %1301 = vmatpush.msra.mxu0 %v1239
    %1302 = vmatpush.msra.mxu0 %v1237
    %1303 = vmatpush.msra.mxu0 %v1235
    %1304 = vmatpush.msra.mxu0 %v1233
    %1305 = vmatmul.f32.gmra.mxu0 %v1285
    %v1306 = vpop.f32.mrf.mxu0
    %v1307 = vadd.f32 0.0, %v1306
    %1308 = vmatmul.f32.gmra.mxu0 %v1287
    %v1309 = vpop.f32.mrf.mxu0
    %v1310 = vadd.f32 0.0, %v1309
    %1311 = vdwg.mxu0
    %1312 = vmatpush.msra.mxu0 0.0
    %1313 = vmatpush.msra.mxu0 %v1262
    %1314 = vmatpush.msra.mxu0 %v1260
    %1315 = vmatpush.msra.mxu0 %v1258
    %1316 = vmatpush.msra.mxu0 %v1256
    %1317 = vmatpush.msra.mxu0 %v1254
    %1318 = vmatpush.msra.mxu0 %v1252
    %1319 = vmatpush.msra.mxu0 %v1250
    %1320 = vmatpush.msra.mxu0 %v1248
    %1321 = vmatpush.msra.mxu0 %v1246
    %1322 = vmatpush.msra.mxu0 %v1244
    %1323 = vmatpush.msra.mxu0 %v1242
    %1324 = vmatpush.msra.mxu0 %v1240
    %1325 = vmatpush.msra.mxu0 %v1238
    %1326 = vmatpush.msra.mxu0 %v1236
    %1327 = vmatpush.msra.mxu0 %v1234
    %1328 = vmatmul.f32.gmra.mxu0 %v1285
    %v1329 = vpop.f32.mrf.mxu0
    %v1330 = vadd.f32 0.0, %v1329
    %1331 = vmatmul.f32.gmra.mxu0 %v1287
    %v1332 = vpop.f32.mrf.mxu0
    %v1333 = vadd.f32 0.0, %v1332
    %1334 = vdwg.mxu0
    %s1335 = scalar_lea.vmem %s3, 960
    %v1336 = vld [vmem:[%s1335] sm:$0xff]
    %v1337 = vld [vmem:[%s1335 + $0x8] sm:$0xff]
    %v1338 = vld [vmem:[%s1335 + $0x10] sm:$0xff]
    %v1339 = vld [vmem:[%s1335 + $0x18] sm:$0xff]
    %v1340 = vld [vmem:[%s1335 + $0x20] sm:$0xff]
    %v1341 = vld [vmem:[%s1335 + $0x28] sm:$0xff]
    %v1342 = vld [vmem:[%s1335 + $0x30] sm:$0xff]
    %v1343 = vld [vmem:[%s1335 + $0x38] sm:$0xff]
    %v1344 = vld [vmem:[%s1335 + $0x40] sm:$0xff]
    %v1345 = vld [vmem:[%s1335 + $0x48] sm:$0xff]
    %v1346 = vld [vmem:[%s1335 + $0x50] sm:$0xff]
    %v1347 = vld [vmem:[%s1335 + $0x58] sm:$0xff]
    %v1348 = vld [vmem:[%s1335 + $0x60] sm:$0xff]
    %v1349 = vld [vmem:[%s1335 + $0x68] sm:$0xff]
    %v1350 = vld [vmem:[%s1335 + $0x70] sm:$0xff]
    %v1351 = vld [vmem:[%s1335 + $0x78] sm:$0xff]
    %v1352 = vld [vmem:[%s1335 + $0x80] sm:$0xff]
    %v1353 = vld [vmem:[%s1335 + $0x88] sm:$0xff]
    %v1354 = vld [vmem:[%s1335 + $0x90] sm:$0xff]
    %v1355 = vld [vmem:[%s1335 + $0x98] sm:$0xff]
    %v1356 = vld [vmem:[%s1335 + $0xa0] sm:$0xff]
    %v1357 = vld [vmem:[%s1335 + $0xa8] sm:$0xff]
    %v1358 = vld [vmem:[%s1335 + $0xb0] sm:$0xff]
    %v1359 = vld [vmem:[%s1335 + $0xb8] sm:$0xff]
    %v1360 = vld [vmem:[%s1335 + $0xc0] sm:$0xff]
    %v1361 = vld [vmem:[%s1335 + $0xc8] sm:$0xff]
    %v1362 = vld [vmem:[%s1335 + $0xd0] sm:$0xff]
    %v1363 = vld [vmem:[%s1335 + $0xd8] sm:$0xff]
    %v1364 = vld [vmem:[%s1335 + $0xe0] sm:$0xff]
    %v1365 = vld [vmem:[%s1335 + $0xe8] sm:$0xff]
    %v1368 = vperm.slane %v1023, 0
    %v1369 = vperm.slane %v1035, 0
    %v1370 = vsel %vm1129, %v1117, %v1116
    %v1371 = vsel %vm1131, %v1118, %v1370
    %v1372 = vsel %vm1133, %v1119, %v1371
    %v1373 = vsel %vm1135, %v1120, %v1372
    %v1374 = vsel %vm1137, %v1267, %v1373
    %v1375 = vsel %vm1139, %v1268, %v1374
    %v1376 = vsel %vm1141, %v1368, %v1375
    %v1377 = vsel %vm1129, %v1125, %v1124
    %v1378 = vsel %vm1131, %v1126, %v1377
    %v1379 = vsel %vm1133, %v1127, %v1378
    %v1380 = vsel %vm1135, %v1128, %v1379
    %v1381 = vsel %vm1137, %v1269, %v1380
    %v1382 = vsel %vm1139, %v1270, %v1381
    %v1383 = vsel %vm1141, %v1369, %v1382
    %v1384 = vsel %vm1150, %v1376, 0
    %v1386 = vsel %vm1150, %v1383, 0
    %1388 = vmatpush.msra.mxu0 0.0
    %1389 = vmatpush.msra.mxu0 %v1364
    %1390 = vmatpush.msra.mxu0 %v1362
    %1391 = vmatpush.msra.mxu0 %v1360
    %1392 = vmatpush.msra.mxu0 %v1358
    %1393 = vmatpush.msra.mxu0 %v1356
    %1394 = vmatpush.msra.mxu0 %v1354
    %1395 = vmatpush.msra.mxu0 %v1352
    %1396 = vmatpush.msra.mxu0 %v1350
    %1397 = vmatpush.msra.mxu0 %v1348
    %1398 = vmatpush.msra.mxu0 %v1346
    %1399 = vmatpush.msra.mxu0 %v1344
    %1400 = vmatpush.msra.mxu0 %v1342
    %1401 = vmatpush.msra.mxu0 %v1340
    %1402 = vmatpush.msra.mxu0 %v1338
    %1403 = vmatpush.msra.mxu0 %v1336
    %1404 = vmatmul.f32.gmra.mxu0 %v1384
    %v1405 = vpop.f32.mrf.mxu0
    %v1406 = vadd.f32 0.0, %v1405
    %1407 = vmatmul.f32.gmra.mxu0 %v1386
    %v1408 = vpop.f32.mrf.mxu0
    %v1409 = vadd.f32 0.0, %v1408
    %1410 = vdwg.mxu0
    %1411 = vmatpush.msra.mxu0 0.0
    %1412 = vmatpush.msra.mxu0 %v1365
    %1413 = vmatpush.msra.mxu0 %v1363
    %1414 = vmatpush.msra.mxu0 %v1361
    %1415 = vmatpush.msra.mxu0 %v1359
    %1416 = vmatpush.msra.mxu0 %v1357
    %1417 = vmatpush.msra.mxu0 %v1355
    %1418 = vmatpush.msra.mxu0 %v1353
    %1419 = vmatpush.msra.mxu0 %v1351
    %1420 = vmatpush.msra.mxu0 %v1349
    %1421 = vmatpush.msra.mxu0 %v1347
    %1422 = vmatpush.msra.mxu0 %v1345
    %1423 = vmatpush.msra.mxu0 %v1343
    %1424 = vmatpush.msra.mxu0 %v1341
    %1425 = vmatpush.msra.mxu0 %v1339
    %1426 = vmatpush.msra.mxu0 %v1337
    %1427 = vmatmul.f32.gmra.mxu0 %v1384
    %v1428 = vpop.f32.mrf.mxu0
    %v1429 = vadd.f32 0.0, %v1428
    %1430 = vmatmul.f32.gmra.mxu0 %v1386
    %v1431 = vpop.f32.mrf.mxu0
    %v1432 = vadd.f32 0.0, %v1431
    %1433 = vdwg.mxu0
    %v1436 = vperm.slane %v1012, 0
    %v1437 = vperm.slane %v1024, 0
    %v1438 = vsel %vm1129, %v1113, %v1436
    %v1439 = vsel %vm1131, %v1114, %v1438
    %v1440 = vsel %vm1133, %v1115, %v1439
    %v1441 = vsel %vm1135, %v1116, %v1440
    %v1442 = vsel %vm1137, %v1117, %v1441
    %v1443 = vsel %vm1139, %v1118, %v1442
    %v1444 = vsel %vm1141, %v1119, %v1443
    %v1445 = vsel %vm1129, %v1121, %v1437
    %v1446 = vsel %vm1131, %v1122, %v1445
    %v1447 = vsel %vm1133, %v1123, %v1446
    %v1448 = vsel %vm1135, %v1124, %v1447
    %v1449 = vsel %vm1137, %v1125, %v1448
    %v1450 = vsel %vm1139, %v1126, %v1449
    %v1451 = vsel %vm1141, %v1127, %v1450
    %v1452 = vsel %vm1150, %v1444, 0
    %v1454 = vsel %vm1150, %v1451, 0
    %1456 = vmatpush.msra.mxu0 0.0
    %1457 = vmatpush.msra.mxu0 %v1064
    %1458 = vmatpush.msra.mxu0 %v1062
    %1459 = vmatpush.msra.mxu0 %v1060
    %1460 = vmatpush.msra.mxu0 %v1058
    %1461 = vmatpush.msra.mxu0 %v1056
    %1462 = vmatpush.msra.mxu0 %v1054
    %1463 = vmatpush.msra.mxu0 %v1052
    %1464 = vmatpush.msra.mxu0 %v1050
    %1465 = vmatpush.msra.mxu0 %v1048
    %1466 = vmatpush.msra.mxu0 %v1046
    %1467 = vmatpush.msra.mxu0 %v1044
    %1468 = vmatpush.msra.mxu0 %v1042
    %1469 = vmatpush.msra.mxu0 %v1040
    %1470 = vmatpush.msra.mxu0 %v1038
    %1471 = vmatpush.msra.mxu0 %v1036
    %1472 = vmatmul.f32.gmra.mxu0 %v1452
    %v1473 = vpop.f32.mrf.mxu0
    %v1474 = vadd.f32 %v1173, %v1473
    %1475 = vmatmul.f32.gmra.mxu0 %v1454
    %v1476 = vpop.f32.mrf.mxu0
    %v1477 = vadd.f32 %v1176, %v1476
    %1478 = vdwg.mxu0
    %1479 = vmatpush.msra.mxu0 0.0
    %1480 = vmatpush.msra.mxu0 %v1065
    %1481 = vmatpush.msra.mxu0 %v1063
    %1482 = vmatpush.msra.mxu0 %v1061
    %1483 = vmatpush.msra.mxu0 %v1059
    %1484 = vmatpush.msra.mxu0 %v1057
    %1485 = vmatpush.msra.mxu0 %v1055
    %1486 = vmatpush.msra.mxu0 %v1053
    %1487 = vmatpush.msra.mxu0 %v1051
    %1488 = vmatpush.msra.mxu0 %v1049
    %1489 = vmatpush.msra.mxu0 %v1047
    %1490 = vmatpush.msra.mxu0 %v1045
    %1491 = vmatpush.msra.mxu0 %v1043
    %1492 = vmatpush.msra.mxu0 %v1041
    %1493 = vmatpush.msra.mxu0 %v1039
    %1494 = vmatpush.msra.mxu0 %v1037
    %1495 = vmatmul.f32.gmra.mxu0 %v1452
    %v1496 = vpop.f32.mrf.mxu0
    %v1497 = vadd.f32 %v1196, %v1496
    %1498 = vmatmul.f32.gmra.mxu0 %v1454
    %v1499 = vpop.f32.mrf.mxu0
    %v1500 = vadd.f32 %v1199, %v1499
    %1501 = vdwg.mxu0
    %v1502 = vsel %vm1129, %v1115, %v1114
    %v1503 = vsel %vm1131, %v1116, %v1502
    %v1504 = vsel %vm1133, %v1117, %v1503
    %v1505 = vsel %vm1135, %v1118, %v1504
    %v1506 = vsel %vm1137, %v1119, %v1505
    %v1507 = vsel %vm1139, %v1120, %v1506
    %v1508 = vsel %vm1141, %v1267, %v1507
    %v1509 = vsel %vm1129, %v1123, %v1122
    %v1510 = vsel %vm1131, %v1124, %v1509
    %v1511 = vsel %vm1133, %v1125, %v1510
    %v1512 = vsel %vm1135, %v1126, %v1511
    %v1513 = vsel %vm1137, %v1127, %v1512
    %v1514 = vsel %vm1139, %v1128, %v1513
    %v1515 = vsel %vm1141, %v1269, %v1514
    %v1516 = vsel %vm1150, %v1508, 0
    %v1518 = vsel %vm1150, %v1515, 0
    %1520 = vmatpush.msra.mxu0 0.0
    %1521 = vmatpush.msra.mxu0 %v1230
    %1522 = vmatpush.msra.mxu0 %v1228
    %1523 = vmatpush.msra.mxu0 %v1226
    %1524 = vmatpush.msra.mxu0 %v1224
    %1525 = vmatpush.msra.mxu0 %v1222
    %1526 = vmatpush.msra.mxu0 %v1220
    %1527 = vmatpush.msra.mxu0 %v1218
    %1528 = vmatpush.msra.mxu0 %v1216
    %1529 = vmatpush.msra.mxu0 %v1214
    %1530 = vmatpush.msra.mxu0 %v1212
    %1531 = vmatpush.msra.mxu0 %v1210
    %1532 = vmatpush.msra.mxu0 %v1208
    %1533 = vmatpush.msra.mxu0 %v1206
    %1534 = vmatpush.msra.mxu0 %v1204
    %1535 = vmatpush.msra.mxu0 %v1202
    %1536 = vmatmul.f32.gmra.mxu0 %v1516
    %v1537 = vpop.f32.mrf.mxu0
    %v1538 = vadd.f32 %v1307, %v1537
    %1539 = vmatmul.f32.gmra.mxu0 %v1518
    %v1540 = vpop.f32.mrf.mxu0
    %v1541 = vadd.f32 %v1310, %v1540
    %1542 = vdwg.mxu0
    %1543 = vmatpush.msra.mxu0 0.0
    %1544 = vmatpush.msra.mxu0 %v1231
    %1545 = vmatpush.msra.mxu0 %v1229
    %1546 = vmatpush.msra.mxu0 %v1227
    %1547 = vmatpush.msra.mxu0 %v1225
    %1548 = vmatpush.msra.mxu0 %v1223
    %1549 = vmatpush.msra.mxu0 %v1221
    %1550 = vmatpush.msra.mxu0 %v1219
    %1551 = vmatpush.msra.mxu0 %v1217
    %1552 = vmatpush.msra.mxu0 %v1215
    %1553 = vmatpush.msra.mxu0 %v1213
    %1554 = vmatpush.msra.mxu0 %v1211
    %1555 = vmatpush.msra.mxu0 %v1209
    %1556 = vmatpush.msra.mxu0 %v1207
    %1557 = vmatpush.msra.mxu0 %v1205
    %1558 = vmatpush.msra.mxu0 %v1203
    %1559 = vmatmul.f32.gmra.mxu0 %v1516
    %v1560 = vpop.f32.mrf.mxu0
    %v1561 = vadd.f32 %v1330, %v1560
    %1562 = vmatmul.f32.gmra.mxu0 %v1518
    %v1563 = vpop.f32.mrf.mxu0
    %v1564 = vadd.f32 %v1333, %v1563
    %1565 = vdwg.mxu0
    %v1566 = vadd.f32 %v1474, %v1538
    %v1567 = vadd.f32 %v1497, %v1561
    %v1568 = vadd.f32 %v1477, %v1541
    %v1569 = vadd.f32 %v1500, %v1564
    %v1570 = vadd.f32 %v1566, %v1406
    %v1571 = vadd.f32 %v1567, %v1429
    %v1572 = vadd.f32 %v1568, %v1409
    %v1573 = vadd.f32 %v1569, %v1432
    %1578 = vrot.lane.b32.xlu0 %v1570, 48
    %v1579 = vpop.permute.xlu0 %1578
    %1580 = vrot.lane.b32.xlu0 %v1571, 48
    %v1581 = vpop.permute.xlu0 %1580
    %1582 = vrot.lane.b32.xlu0 %v1572, 48
    %v1583 = vpop.permute.xlu0 %1582
    %1584 = vrot.lane.b32.xlu0 %v1573, 48
    %v1585 = vpop.permute.xlu0 %1584
    %vm1586 = vcmask 392192
    %v1587 = vsel %vm1586, %v1579, %v1581
    %v1588 = vsel %vm1586, %v1583, %v1585
    %v1591 = vmax.f32 %v1570, %v1587
    %v1592 = vmax.f32 %v1572, %v1588
    %v1595 = vrot.slane %v1591, 1
    %v1596 = vrot.slane %v1592, 1
    %v1599 = vmax.f32 %v1591, %v1595
    %v1600 = vmax.f32 %v1592, %v1596
    %v1603 = vsel %vm1135, %v1599, %v1599
    %v1604 = vsel %vm1139, %v1599, %v1603
    %v1605 = vrot.slane %v1600, 7
    %v1606 = vsel %vm1129, %v1605, %v1604
    %v1607 = vsel %vm1133, %v1605, %v1606
    %v1608 = vsel %vm1137, %v1605, %v1607
    %v1609 = vsel %vm1141, %v1605, %v1608
    %vm1611 = vcmask 648192
    %1612 = vst.msk [vmem:[#allocation2] sm:$0x3] %vm1611, %v1609
    %1613 = vst.sshfl [vmem:[#allocation1] sm:$0xff pattern:$0x73625140] %v1599
    %s1614 = scalar_lea.vmem [#allocation1], 1
    %v1615 = vld [vmem:[%s1614] ss:$4 sm:$0xff]
    %1616 = vst.sshfl [vmem:[#allocation1 + $0x20] sm:$0xff pattern:$0x73625140] %v1600
    %s1617 = scalar_lea.vmem [#allocation1], 33
    %v1618 = vld [vmem:[%s1617] ss:$4 sm:$0xff]
    %v1619 = vsel %vm1135, %v1615, %v1615
    %v1620 = vsel %vm1139, %v1615, %v1619
    %v1621 = vrot.slane %v1618, 7
    %v1622 = vsel %vm1129, %v1621, %v1620
    %v1623 = vsel %vm1133, %v1621, %v1622
    %v1624 = vsel %vm1137, %v1621, %v1623
    %v1625 = vsel %vm1141, %v1621, %v1624
    %1626 = vrot.lane.b32.xlu0 %v1625, 80
    %v1627 = vpop.permute.xlu0 %1626
    %v1628 = vrot.slane %v1627, 6
    %vm1629 = vcmask 654336
    %v1630 = vsel %vm1629, %v1628, %v1627
    %vm1632 = vcmask 1042048
    %vm1633 = vcmask 257026
    %vm1634 = vmor %vm1633, %vm1632
    %1635 = vst.msk [vmem:[#allocation2] sm:$0xf] %vm1634, %v1630
    %1636 = vst.sshfl [vmem:[#allocation1] sm:$0xff pattern:$0x73625140] %v1599
    %s1637 = scalar_lea.vmem [#allocation1], 2
    %v1638 = vld [vmem:[%s1637] ss:$4 sm:$0xff]
    %1639 = vst.sshfl [vmem:[#allocation1 + $0x20] sm:$0xff pattern:$0x73625140] %v1600
    %s1640 = scalar_lea.vmem [#allocation1], 34
    %v1641 = vld [vmem:[%s1640] ss:$4 sm:$0xff]
    %v1642 = vsel %vm1135, %v1638, %v1638
    %v1643 = vsel %vm1139, %v1638, %v1642
    %v1644 = vrot.slane %v1641, 7
    %v1645 = vsel %vm1129, %v1644, %v1643
    %v1646 = vsel %vm1133, %v1644, %v1645
    %v1647 = vsel %vm1137, %v1644, %v1646
    %v1648 = vsel %vm1141, %v1644, %v1647
    %1649 = vrot.lane.b32.xlu0 %v1648, 32
    %v1650 = vpop.permute.xlu0 %1649
    %vm1652 = vcmask 910592
    %1653 = vst.msk [vmem:[#allocation2 + $0x2] sm:$0x3] %vm1652, %v1650
    %1654 = vst.sshfl [vmem:[#allocation1] sm:$0xff pattern:$0x73625140] %v1599
    %s1655 = scalar_lea.vmem [#allocation1], 3
    %v1656 = vld [vmem:[%s1655] ss:$4 sm:$0xff]
    %1657 = vst.sshfl [vmem:[#allocation1 + $0x20] sm:$0xff pattern:$0x73625140] %v1600
    %s1658 = scalar_lea.vmem [#allocation1], 35
    %v1659 = vld [vmem:[%s1658] ss:$4 sm:$0xff]
    %v1660 = vsel %vm1135, %v1656, %v1656
    %v1661 = vsel %vm1139, %v1656, %v1660
    %v1662 = vrot.slane %v1659, 7
    %v1663 = vsel %vm1129, %v1662, %v1661
    %v1664 = vsel %vm1133, %v1662, %v1663
    %v1665 = vsel %vm1137, %v1662, %v1664
    %v1666 = vsel %vm1141, %v1662, %v1665
    %1667 = vrot.lane.b32.xlu0 %v1666, 112
    %v1668 = vpop.permute.xlu0 %1667
    %v1669 = vrot.slane %v1668, 6
    %vm1670 = vcmask 916480
    %v1671 = vsel %vm1670, %v1669, %v1668
    %vm1673 = vcmask 1042304
    %vm1674 = vcmask 519170
    %vm1675 = vmor %vm1674, %vm1673
    %1676 = vst.msk [vmem:[#allocation2 + $0x2] sm:$0xf] %vm1675, %v1671
    %v1677 = vld [vmem:[#allocation2] sm:$0x3f]
    %v1678 = vld [vmem:[%s4] sm:$0x7]
    %v1680 = vperm.slane %v1678, 0
    %v1681 = vperm.slane %v1678, 1
    %v1682 = vperm.slane %v1678, 2
    %v1683 = vrot.slane %v1681, 6
    %v1684 = vrot.slane %v1682, 4
    %v1685 = vsel %vm636, %v1680, %v1683
    %v1686 = vsel %vm94, %v1685, %v1684
    %v1688 = vadd.f32 %v1677, %v1686
    %v1689 = vmax.f32 %v1688, 0.0
    %v1690 = vld [vmem:[%s5] sm:$0xff]
    %v1691 = vld [vmem:[%s5 + $0x8] sm:$0xff]
    %v1692 = vld [vmem:[%s5 + $0x10] sm:$0xff]
    %v1693 = vld [vmem:[%s5 + $0x18] sm:$0xff]
    %v1694 = vld [vmem:[%s5 + $0x20] sm:$0xff]
    %v1695 = vld [vmem:[%s5 + $0x28] sm:$0xff]
    %v1696 = vld [vmem:[%s5 + $0x30] sm:$0xff]
    %v1697 = vld [vmem:[%s5 + $0x38] sm:$0xff]
    %v1698 = vld [vmem:[%s5 + $0x40] sm:$0xff]
    %v1699 = vld [vmem:[%s5 + $0x48] sm:$0xff]
    %v1700 = vld [vmem:[%s5 + $0x50] sm:$0xff]
    %v1701 = vld [vmem:[%s5 + $0x58] sm:$0xff]
    %v1702 = vld [vmem:[%s5 + $0x60] sm:$0xff]
    %v1703 = vld [vmem:[%s5 + $0x68] sm:$0xff]
    %v1704 = vld [vmem:[%s5 + $0x70] sm:$0xff]
    %v1705 = vld [vmem:[%s5 + $0x78] sm:$0xff]
    %v1706 = vld [vmem:[%s5 + $0x80] sm:$0xff]
    %v1707 = vld [vmem:[%s5 + $0x88] sm:$0xff]
    %v1708 = vld [vmem:[%s5 + $0x90] sm:$0xff]
    %v1709 = vld [vmem:[%s5 + $0x98] sm:$0xff]
    %v1710 = vld [vmem:[%s5 + $0xa0] sm:$0xff]
    %v1711 = vld [vmem:[%s5 + $0xa8] sm:$0xff]
    %v1712 = vld [vmem:[%s5 + $0xb0] sm:$0xff]
    %v1713 = vld [vmem:[%s5 + $0xb8] sm:$0xff]
    %v1714 = vld [vmem:[%s5 + $0xc0] sm:$0xff]
    %v1715 = vld [vmem:[%s5 + $0xc8] sm:$0xff]
    %v1716 = vld [vmem:[%s5 + $0xd0] sm:$0xff]
    %v1717 = vld [vmem:[%s5 + $0xd8] sm:$0xff]
    %v1718 = vld [vmem:[%s5 + $0xe0] sm:$0xff]
    %v1719 = vld [vmem:[%s5 + $0xe8] sm:$0xff]
    %v1720 = vld [vmem:[%s5 + $0xf0] sm:$0xff]
    %v1721 = vld [vmem:[%s5 + $0xf8] sm:$0xff]
    %v1722 = vld [vmem:[%s5 + $0x100] sm:$0xff]
    %v1723 = vld [vmem:[%s5 + $0x108] sm:$0xff]
    %v1724 = vld [vmem:[%s5 + $0x110] sm:$0xff]
    %v1725 = vld [vmem:[%s5 + $0x118] sm:$0xff]
    %v1726 = vld [vmem:[%s5 + $0x120] sm:$0xff]
    %v1727 = vld [vmem:[%s5 + $0x128] sm:$0xff]
    %v1728 = vld [vmem:[%s5 + $0x130] sm:$0xff]
    %v1729 = vld [vmem:[%s5 + $0x138] sm:$0xff]
    %v1730 = vld [vmem:[%s6] sm:$0x1]
    %v1732 = vperm.slane %v1730, 0
    %1735 = vst [vmem:[#allocation1] ss:$4 sm:$0xff] %v1689
    %v1736 = vld.sshfl [vmem:[#allocation1] sm:$0xff pattern:$0x73625140]
    %v1737 = vld.sshfl [vmem:[#allocation1 + $0x8] sm:$0xff pattern:$0x73625140]
    %v1738 = vld.sshfl [vmem:[#allocation1 + $0x10] sm:$0xff pattern:$0x73625140]
    %vm1741 = vcmask 523264
    %v1742 = vsel %vm1741, %v1738, 0
    %1744 = vmatpush.msra.mxu0 %v1705
    %1745 = vmatpush.msra.mxu0 %v1704
    %1746 = vmatpush.msra.mxu0 %v1703
    %1747 = vmatpush.msra.mxu0 %v1702
    %1748 = vmatpush.msra.mxu0 %v1701
    %1749 = vmatpush.msra.mxu0 %v1700
    %1750 = vmatpush.msra.mxu0 %v1699
    %1751 = vmatpush.msra.mxu0 %v1698
    %1752 = vmatpush.msra.mxu0 %v1697
    %1753 = vmatpush.msra.mxu0 %v1696
    %1754 = vmatpush.msra.mxu0 %v1695
    %1755 = vmatpush.msra.mxu0 %v1694
    %1756 = vmatpush.msra.mxu0 %v1693
    %1757 = vmatpush.msra.mxu0 %v1692
    %1758 = vmatpush.msra.mxu0 %v1691
    %1759 = vmatpush.msra.mxu0 %v1690
    %1760 = vmatmul.f32.gmra.mxu0 %v1736
    %v1761 = vpop.f32.mrf.mxu0
    %v1762 = vadd.f32 %v1732, %v1761
    %1763 = vdwg.mxu0
    %1764 = vmatpush.msra.mxu0 %v1721
    %1765 = vmatpush.msra.mxu0 %v1720
    %1766 = vmatpush.msra.mxu0 %v1719
    %1767 = vmatpush.msra.mxu0 %v1718
    %1768 = vmatpush.msra.mxu0 %v1717
    %1769 = vmatpush.msra.mxu0 %v1716
    %1770 = vmatpush.msra.mxu0 %v1715
    %1771 = vmatpush.msra.mxu0 %v1714
    %1772 = vmatpush.msra.mxu0 %v1713
    %1773 = vmatpush.msra.mxu0 %v1712
    %1774 = vmatpush.msra.mxu0 %v1711
    %1775 = vmatpush.msra.mxu0 %v1710
    %1776 = vmatpush.msra.mxu0 %v1709
    %1777 = vmatpush.msra.mxu0 %v1708
    %1778 = vmatpush.msra.mxu0 %v1707
    %1779 = vmatpush.msra.mxu0 %v1706
    %1780 = vmatmul.f32.gmra.mxu0 %v1737
    %v1781 = vpop.f32.mrf.mxu0
    %v1782 = vadd.f32 %v1762, %v1781
    %1783 = vdwg.mxu0
    %1784 = vmatpush.msra.mxu0 0.0
    %1785 = vmatpush.msra.mxu0 0.0
    %1786 = vmatpush.msra.mxu0 0.0
    %1787 = vmatpush.msra.mxu0 0.0
    %1788 = vmatpush.msra.mxu0 0.0
    %1789 = vmatpush.msra.mxu0 0.0
    %1790 = vmatpush.msra.mxu0 0.0
    %1791 = vmatpush.msra.mxu0 0.0
    %1792 = vmatpush.msra.mxu0 %v1729
    %1793 = vmatpush.msra.mxu0 %v1728
    %1794 = vmatpush.msra.mxu0 %v1727
    %1795 = vmatpush.msra.mxu0 %v1726
    %1796 = vmatpush.msra.mxu0 %v1725
    %1797 = vmatpush.msra.mxu0 %v1724
    %1798 = vmatpush.msra.mxu0 %v1723
    %1799 = vmatpush.msra.mxu0 %v1722
    %1800 = vmatmul.f32.gmra.mxu0 %v1742
    %v1801 = vpop.f32.mrf.mxu0
    %v1802 = vadd.f32 %v1782, %v1801
    %1803 = vdwg.mxu0
    %v1804 = vmax.f32 %v1802, 0.0
    %v1805 = vld [vmem:[%s7] sm:$0xff]
    %v1806 = vld [vmem:[%s7 + $0x8] sm:$0xff]
    %v1807 = vld [vmem:[%s7 + $0x10] sm:$0xff]
    %v1808 = vld [vmem:[%s7 + $0x18] sm:$0xff]
    %v1809 = vld [vmem:[%s7 + $0x20] sm:$0xff]
    %v1810 = vld [vmem:[%s7 + $0x28] sm:$0xff]
    %v1811 = vld [vmem:[%s7 + $0x30] sm:$0x3]
    %v1812 = vld [vmem:[%s8] sm:$0x1]
    %v1814 = vperm.slane %v1812, 0
    %vm1816 = vcmask 408576
    %v1818 = vsel %vm1816, %v1804, 0
    %v1821 = vsel %vm636, %v1811, 0
    %1823 = vmatpush.msra.mxu0 0.0
    %1824 = vmatpush.msra.mxu0 0.0
    %1825 = vmatpush.msra.mxu0 0.0
    %1826 = vmatpush.msra.mxu0 0.0
    %1827 = vmatpush.msra.mxu0 0.0
    %1828 = vmatpush.msra.mxu0 0.0
    %1829 = vmatpush.msra.mxu0 0.0
    %1830 = vmatpush.msra.mxu0 0.0
    %1831 = vmatpush.msra.mxu0 0.0
    %1832 = vmatpush.msra.mxu0 %v1821
    %1833 = vmatpush.msra.mxu0 %v1810
    %1834 = vmatpush.msra.mxu0 %v1809
    %1835 = vmatpush.msra.mxu0 %v1808
    %1836 = vmatpush.msra.mxu0 %v1807
    %1837 = vmatpush.msra.mxu0 %v1806
    %1838 = vmatpush.msra.mxu0 %v1805
    %1839 = vmatmul.f32.gmra.mxu0 %v1818
    %v1840 = vpop.f32.mrf.mxu0
    %v1841 = vadd.f32 %v1814, %v1840
    %1842 = vdwg.mxu0
    %vm1843 = vcmask 74752
    %v1844 = vsel %vm1843, %v1841, -inf
    %v1845 = vrot.slane %v1844, 4
    %v1846 = vmax.f32 %v1844, %v1845
    %v1847 = vrot.slane %v1846, 2
    %v1848 = vmax.f32 %v1846, %v1847
    %v1849 = vrot.slane %v1848, 1
    %v1850 = vmax.f32 %v1848, %v1849
    %v1851 = vsub.f32 %v1841, %v1850
    %v1852 = vmul.f32 %v1851, 1.442695
    %v1853 = vpow.pop %v1852
    %v1854 = vsel %vm1843, %v1853, 0.0
    %v1855 = vrot.slane %v1854, 4
    %v1856 = vadd.f32 %v1854, %v1855
    %v1857 = vrot.slane %v1856, 2
    %v1858 = vadd.f32 %v1856, %v1857
    %v1859 = vrot.slane %v1858, 1
    %v1860 = vadd.f32 %v1858, %v1859
    %v1861 = vlog2.pop %v1860
    %v1862 = vmul.f32 %v1861, 0.6931472
    %v1863 = vsub.f32 %v1851, %v1862
    %1864 = vst.msk [vmem:[#allocation3] sm:$0x3] %vm1843, %v1863
    // Predicated region
    $region38: #{net_forward.1} parent=1 // pred_check
      _
    $region39: #{net_forward.1} parent=1 // pred_check_branch
      %1866 = sbr.rel (0) target = $region41
    $region40: #{net_forward.1} parent=1 // pred_region
      %1868 = vsyncadd [#allocation4], 0
      %s1870 = sshll.u32 [#allocation3], 4
      %s1871 = int_to_ptr.vmem [resolvable:$true] %s1870
      %s1872 = sshll.u32 %s9, 4
      %s1873 = int_to_ptr.hbm [resolvable:$true] %s1872
      %1875 = dma.vmem_to_hbm [thread:$0]  %s1871, 32, %s1873, [#allocation4]
    $region41: #{net_forward.1} parent=1 // pred_fallthru
      _
    // Predicated region
    $region42: #{net_forward.1} parent=1 // pred_check
      _
    $region43: #{net_forward.1} parent=1 // pred_check_branch
      %1877 = sbr.rel (0) target = $region45
    $region44: #{net_forward.1} parent=1 // pred_region
      %1879 = dma.done [#allocation4], 32
    $region45: #{net_forward.1} parent=1 // pred_fallthru
      _
    %1880 = vsyncpa [#allocation4], 1

</llo_original>
